<compile_context>
chip_gen: v7x
topology: tpu7x:2x2x1
jax: 0.10.0
libtpu: 0.0.40
codegen_flags: <defaults>
</compile_context>

<pallas_src>
import numpy as np

import jax
import jax.numpy as jnp
from jax.experimental import pallas as pl
from jax.experimental.pallas import tpu as pltpu


# HAAR[s, di, dj], s in {LL, LH, HL, HH}.
_HAAR = np.array(
    [[[1.0, 1.0], [1.0, 1.0]],
     [[1.0, -1.0], [1.0, -1.0]],
     [[1.0, 1.0], [-1.0, -1.0]],
     [[1.0, -1.0], [-1.0, 1.0]]], dtype=np.float32)

_HIGHEST = jax.lax.Precision.HIGHEST


# ----------------------------------------------------------------------------
# Weight folding (wrapper-side constant fold, not per-element pre-scaling).
# ----------------------------------------------------------------------------
def _fold_haar_weights(conv_w, conv_b, C, dtype):
    """Fold Haar +/-1 signs and bias into the 1x1-conv weights.

    Returns wf [4C, C], bf [4C, 1] with rows ordered plane-major:
    row p*C + k, p = 2*di + dj, so that  wf @ x + bf  directly yields the four
    sub-pixel planes stacked along the row axis.
    """
    w4 = conv_w.reshape(4, C, C).astype(dtype)     # [s, k, c]
    b4 = conv_b.reshape(4, C).astype(dtype)        # [s, k]
    # sgn[p, s] = HAAR[s, di, dj] with p = 2*di + dj.
    sgn = jnp.asarray(_HAAR.reshape(4, 4).T, dtype=dtype)
    wf = jnp.einsum("ps,skc->pkc", sgn, w4, precision=_HIGHEST).reshape(4 * C, C)
    bf = jnp.einsum("ps,sk->pk", sgn, b4, precision=_HIGHEST).reshape(4 * C, 1)
    return wf, bf


# ----------------------------------------------------------------------------
# Tile-size heuristics (keep one in+out buffer set <= ~4 MiB; Pallas
# double-buffers, so the VMEM working set stays <= ~8 MiB + weights).
# ----------------------------------------------------------------------------
def _pick_row_tile(H, W, C, budget_bytes=4 * 1024 * 1024):
    # one buffer set: (C*Ht*W + C*Ht*4W) * 4 bytes = 20*C*Ht*W bytes
    for ht in (16, 8, 4, 2, 1):
        if H % ht == 0 and 20 * C * ht * W <= budget_bytes:
            return ht
    return 1


def _pick_spatial_tile(HW, C, budget_bytes=4 * 1024 * 1024):
    # one buffer set: (C*T + 4C*T) * 4 bytes = 20*C*T bytes
    for t in (2048, 1024, 512, 256, 128):
        if HW % t == 0 and 20 * C * t <= budget_bytes:
            return t
    return HW


# ----------------------------------------------------------------------------
# Primary kernel: fused matmul + in-kernel 2x2 sub-pixel interleave.
# ----------------------------------------------------------------------------
def _haar_fused_kernel(x_ref, w_ref, b_ref, o_ref):
    # x_ref: [1, C, Ht, W]   w_ref: [4C, C] (plane-major)   b_ref: [4C, 1]
    # o_ref: [1, C, Ht, 4W]  where column q = di*2W + 2w + dj  (== NCHW layout).
    C = x_ref.shape[1]
    Ht = x_ref.shape[2]
    W = x_ref.shape[3]

    w = w_ref[...]
    b = b_ref[...]

    for hh in range(Ht):                            # static, unrolled
        xh = x_ref[0, :, hh, :]                     # [C, W]
        y = jnp.dot(w, xh, preferred_element_type=jnp.float32) + b   # [4C, W]
        y = y.astype(o_ref.dtype)
        for di in range(2):
            for dj in range(2):
                p = 2 * di + dj
                # out[k, 2h+di, 2w+dj] -> lanes di*2W + dj, step 2.
                o_ref[0, :, hh, pl.ds(2 * W * di + dj, W, stride=2)] = (
                    y[p * C:(p + 1) * C, :])


def _haar_upsampling_fused(x, wf, bf):
    B, C, H, W = x.shape
    C4 = 4 * C
    Ht = _pick_row_tile(H, W, C)

    out = pl.pallas_call(
        _haar_fused_kernel,
        out_shape=jax.ShapeDtypeStruct((B, C, H, 4 * W), x.dtype),
        grid=(B, H // Ht),
        in_specs=[
            pl.BlockSpec((1, C, Ht, W), lambda b, t: (b, 0, t, 0)),
            pl.BlockSpec((C4, C), lambda b, t: (0, 0)),
            pl.BlockSpec((C4, 1), lambda b, t: (0, 0)),
        ],
        out_specs=pl.BlockSpec((1, C, Ht, 4 * W), lambda b, t: (b, 0, t, 0)),
        compiler_params=pltpu.CompilerParams(
            dimension_semantics=("parallel", "parallel")),
    )(x, wf, bf)

    # [B, C, H, 4W] is row-major identical to [B, C, 2H, 2W]: free reshape.
    return out.reshape(B, C, 2 * H, 2 * W)


# ----------------------------------------------------------------------------
# Fallback kernel: dense plane-major output + one XLA interleave pass.
# ----------------------------------------------------------------------------
def _haar_planes_kernel(x_ref, w_ref, b_ref, o_ref):
    # x_ref: [1, C, T]   w_ref: [4C, C] (plane-major)   b_ref: [4C, 1]
    # o_ref: [1, 4C, T]  (rows = the four sub-pixel planes, (di,dj)-major)
    y = jnp.dot(w_ref[...], x_ref[0], preferred_element_type=jnp.float32)
    o_ref[0] = (y + b_ref[...]).astype(o_ref.dtype)


def _haar_upsampling_planes(x, wf, bf):
    B, C, H, W = x.shape
    C4 = 4 * C
    HW = H * W
    T = _pick_spatial_tile(HW, C)
    x_flat = x.reshape(B, C, HW)

    out = pl.pallas_call(
        _haar_planes_kernel,
        out_shape=jax.ShapeDtypeStruct((B, C4, HW), x.dtype),
        grid=(B, HW // T),
        in_specs=[
            pl.BlockSpec((1, C, T), lambda b, t: (b, 0, t)),
            pl.BlockSpec((C4, C), lambda b, t: (0, 0)),
            pl.BlockSpec((C4, 1), lambda b, t: (0, 0)),
        ],
        out_specs=pl.BlockSpec((1, C4, T), lambda b, t: (b, 0, t)),
        compiler_params=pltpu.CompilerParams(
            dimension_semantics=("parallel", "parallel")),
    )(x_flat, wf, bf)

    # Pure-permutation glue: interleave the 2x2 sub-pixel planes spatially.
    out = out.reshape(B, 2, 2, C, H, W)
    out = jnp.transpose(out, (0, 3, 4, 1, 5, 2))
    return out.reshape(B, C, 2 * H, 2 * W)


# ----------------------------------------------------------------------------
# Public wrapper.
# ----------------------------------------------------------------------------
def haar_upsampling(x, conv_w, conv_b, *, fuse_interleave=True):
    """x: [B, C, H, W] (NCHW), conv_w: [4C, C], conv_b: [4C] -> [B, C, 2H, 2W]."""
    B, C, H, W = x.shape
    wf, bf = _fold_haar_weights(conv_w, conv_b, C, x.dtype)
    if fuse_interleave:
        try:
            return _haar_upsampling_fused(x, wf, bf)
        except Exception:
            # TODO(synk): stride-2 minor-dim stores are not supported by every
            # Mosaic release; fall back to dense planes + one XLA interleave pass.
            pass
    return _haar_upsampling_planes(x, wf, bf)


def haar_upsampling_reference(x, conv_w, conv_b):
    """Plain-JAX reference matching the PyTorch semantics described above."""
    B, C, H, W = x.shape
    y = jnp.einsum("oc,bchw->bohw", conv_w, x, precision=_HIGHEST)
    y = y + conv_b[None, :, None, None]
    y = y.reshape(B, 4, C, H, W)
    haar = jnp.asarray(_HAAR, dtype=y.dtype)
    out = jnp.einsum("bschw,sij->bchiwj", y, haar, precision=_HIGHEST)
    return out.reshape(B, C, 2 * H, 2 * W)


if __name__ == "__main__":
    B, C, H, W = 2, 4, 16, 16
    C4 = 4 * C

    key = jax.random.PRNGKey(0)
    kx, kw, kb = jax.random.split(key, 3)

    x = jax.random.normal(kx, (B, C, H, W), dtype=jnp.float32)

    # nn.Conv2d(C, 4C, 1) default init: U(-1/sqrt(fan_in), 1/sqrt(fan_in)).
    bound = 1.0 / jnp.sqrt(jnp.float32(C))
    conv_w = jax.random.uniform(kw, (C4, C), jnp.float32, -bound, bound)
    conv_b = jax.random.uniform(kb, (C4,), jnp.float32, -bound, bound)

    ref = haar_upsampling_reference(x, conv_w, conv_b)

    out = None
    try:
        cand = jax.block_until_ready(
            haar_upsampling(x, conv_w, conv_b, fuse_interleave=True))
        if cand.shape == ref.shape and bool(
                jnp.allclose(cand, ref, atol=1e-4, rtol=1e-4)):
            out = cand
    except Exception:
        out = None
    if out is None:
        # Guaranteed-dense path (no strided stores).
        out = jax.block_until_ready(
            haar_upsampling(x, conv_w, conv_b, fuse_interleave=False))

    assert out.shape == (B, C, 2 * H, 2 * W), out.shape
    assert jnp.allclose(out, ref, atol=1e-4, rtol=1e-4), (
        float(jnp.max(jnp.abs(out - ref))))

    print("KERNEL_OK")
</pallas_src>

<mosaic_0001>
module attributes {stable_mosaic.version = 11 : i64} {
  func.func @_haar_fused_kernel(%arg0: i32, %arg1: i32, %arg2: memref<1x4x16x16xf32, #tpu.memory_space<vmem>>, %arg3: memref<16x4xf32, #tpu.memory_space<vmem>>, %arg4: memref<16x1xf32, #tpu.memory_space<vmem>>, %arg5: memref<1x4x16x64xf32, #tpu.memory_space<vmem>>) attributes {dimension_semantics = [#tpu.dimension_semantics<parallel>, #tpu.dimension_semantics<parallel>], iteration_bounds = array<i64: 2, 1>, scalar_prefetch = 0 : i64, scratch_operands = 0 : i64, tpu.core_type = #tpu.core_type<tc>, window_params = [{transform_indices = @transform_0, window_bounds = array<i64: 1, 4, 16, 16>}, {pipeline_mode = #tpu.pipeline_mode<synchronous>, transform_indices = @transform_1, window_bounds = array<i64: 16, 4>}, {pipeline_mode = #tpu.pipeline_mode<synchronous>, transform_indices = @transform_2, window_bounds = array<i64: 16, 1>}, {transform_indices = @transform_3, window_bounds = array<i64: 1, 4, 16, 64>}]} {
    %c0 = arith.constant 0 : index
    %c0_0 = arith.constant 0 : index
    %0 = vector.load %arg3[%c0, %c0_0] : memref<16x4xf32, #tpu.memory_space<vmem>>, vector<16x4xf32>
    %c0_1 = arith.constant 0 : index
    %c0_2 = arith.constant 0 : index
    %1 = vector.load %arg4[%c0_1, %c0_2] : memref<16x1xf32, #tpu.memory_space<vmem>>, vector<16x1xf32>
    %c0_3 = arith.constant 0 : index
    %c0_4 = arith.constant 0 : index
    %c0_5 = arith.constant 0 : index
    %c0_6 = arith.constant 0 : index
    %2 = vector.load %arg2[%c0_3, %c0_4, %c0_5, %c0_6] : memref<1x4x16x16xf32, #tpu.memory_space<vmem>>, vector<1x4x1x16xf32>
    %3 = vector.shape_cast %2 : vector<1x4x1x16xf32> to vector<4x16xf32>
    %cst = arith.constant dense<0.000000e+00> : vector<16x16xf32>
    %4 = tpu.matmul %0, %3, %cst {dimension_numbers = #tpu.dot_dimension_numbers<[1], [0], [0], [1], [0, 0, 1, 1], [], []>} : vector<16x4xf32>, vector<4x16xf32>, vector<16x16xf32> -> vector<16x16xf32>
    %5 = vector.broadcast %1 : vector<16x1xf32> to vector<16x16xf32>
    %6 = arith.addf %4, %5 : vector<16x16xf32>
    %7 = vector.extract_strided_slice %6 {offsets = [0, 0], sizes = [4, 16], strides = [1, 1]} : vector<16x16xf32> to vector<4x16xf32>
    %c0_7 = arith.constant 0 : index
    %c0_8 = arith.constant 0 : index
    %c0_9 = arith.constant 0 : index
    %c0_10 = arith.constant 0 : index
    %8 = tpu.strided_load %arg5[%c0_7, %c0_8, %c0_9, %c0_10] {strides = array<i32: 1, 1, 1, 2>} : memref<1x4x16x64xf32, #tpu.memory_space<vmem>>, vector<1x4x1x16xf32>
    %9 = vector.shape_cast %8 : vector<1x4x1x16xf32> to vector<4x16xf32>
    %10 = vector.shape_cast %7 : vector<4x16xf32> to vector<1x4x1x16xf32>
    tpu.strided_store %arg5[%c0_7, %c0_8, %c0_9, %c0_10], %10 {strides = array<i32: 1, 1, 1, 2>} : memref<1x4x16x64xf32, #tpu.memory_space<vmem>>, vector<1x4x1x16xf32>
    %11 = vector.extract_strided_slice %6 {offsets = [4, 0], sizes = [4, 16], strides = [1, 1]} : vector<16x16xf32> to vector<4x16xf32>
    %c0_11 = arith.constant 0 : index
    %c0_12 = arith.constant 0 : index
    %c0_13 = arith.constant 0 : index
    %c1 = arith.constant 1 : index
    %12 = tpu.strided_load %arg5[%c0_11, %c0_12, %c0_13, %c1] {strides = array<i32: 1, 1, 1, 2>} : memref<1x4x16x64xf32, #tpu.memory_space<vmem>>, vector<1x4x1x16xf32>
    %13 = vector.shape_cast %12 : vector<1x4x1x16xf32> to vector<4x16xf32>
    %14 = vector.shape_cast %11 : vector<4x16xf32> to vector<1x4x1x16xf32>
    tpu.strided_store %arg5[%c0_11, %c0_12, %c0_13, %c1], %14 {strides = array<i32: 1, 1, 1, 2>} : memref<1x4x16x64xf32, #tpu.memory_space<vmem>>, vector<1x4x1x16xf32>
    %15 = vector.extract_strided_slice %6 {offsets = [8, 0], sizes = [4, 16], strides = [1, 1]} : vector<16x16xf32> to vector<4x16xf32>
    %c0_14 = arith.constant 0 : index
    %c0_15 = arith.constant 0 : index
    %c0_16 = arith.constant 0 : index
    %c32 = arith.constant 32 : index
    %16 = tpu.strided_load %arg5[%c0_14, %c0_15, %c0_16, %c32] {strides = array<i32: 1, 1, 1, 2>} : memref<1x4x16x64xf32, #tpu.memory_space<vmem>>, vector<1x4x1x16xf32>
    %17 = vector.shape_cast %16 : vector<1x4x1x16xf32> to vector<4x16xf32>
    %18 = vector.shape_cast %15 : vector<4x16xf32> to vector<1x4x1x16xf32>
    tpu.strided_store %arg5[%c0_14, %c0_15, %c0_16, %c32], %18 {strides = array<i32: 1, 1, 1, 2>} : memref<1x4x16x64xf32, #tpu.memory_space<vmem>>, vector<1x4x1x16xf32>
    %19 = vector.extract_strided_slice %6 {offsets = [12, 0], sizes = [4, 16], strides = [1, 1]} : vector<16x16xf32> to vector<4x16xf32>
    %c0_17 = arith.constant 0 : index
    %c0_18 = arith.constant 0 : index
    %c0_19 = arith.constant 0 : index
    %c33 = arith.constant 33 : index
    %20 = tpu.strided_load %arg5[%c0_17, %c0_18, %c0_19, %c33] {strides = array<i32: 1, 1, 1, 2>} : memref<1x4x16x64xf32, #tpu.memory_space<vmem>>, vector<1x4x1x16xf32>
    %21 = vector.shape_cast %20 : vector<1x4x1x16xf32> to vector<4x16xf32>
    %22 = vector.shape_cast %19 : vector<4x16xf32> to vector<1x4x1x16xf32>
    tpu.strided_store %arg5[%c0_17, %c0_18, %c0_19, %c33], %22 {strides = array<i32: 1, 1, 1, 2>} : memref<1x4x16x64xf32, #tpu.memory_space<vmem>>, vector<1x4x1x16xf32>
    %c0_20 = arith.constant 0 : index
    %c0_21 = arith.constant 0 : index
    %c1_22 = arith.constant 1 : index
    %c0_23 = arith.constant 0 : index
    %23 = vector.load %arg2[%c0_20, %c0_21, %c1_22, %c0_23] : memref<1x4x16x16xf32, #tpu.memory_space<vmem>>, vector<1x4x1x16xf32>
    %24 = vector.shape_cast %23 : vector<1x4x1x16xf32> to vector<4x16xf32>
    %cst_24 = arith.constant dense<0.000000e+00> : vector<16x16xf32>
    %25 = tpu.matmul %0, %24, %cst_24 {dimension_numbers = #tpu.dot_dimension_numbers<[1], [0], [0], [1], [0, 0, 1, 1], [], []>} : vector<16x4xf32>, vector<4x16xf32>, vector<16x16xf32> -> vector<16x16xf32>
    %26 = vector.broadcast %1 : vector<16x1xf32> to vector<16x16xf32>
    %27 = arith.addf %25, %26 : vector<16x16xf32>
    %28 = vector.extract_strided_slice %27 {offsets = [0, 0], sizes = [4, 16], strides = [1, 1]} : vector<16x16xf32> to vector<4x16xf32>
    %c0_25 = arith.constant 0 : index
    %c0_26 = arith.constant 0 : index
    %c1_27 = arith.constant 1 : index
    %c0_28 = arith.constant 0 : index
    %29 = tpu.strided_load %arg5[%c0_25, %c0_26, %c1_27, %c0_28] {strides = array<i32: 1, 1, 1, 2>} : memref<1x4x16x64xf32, #tpu.memory_space<vmem>>, vector<1x4x1x16xf32>
    %30 = vector.shape_cast %29 : vector<1x4x1x16xf32> to vector<4x16xf32>
    %31 = vector.shape_cast %28 : vector<4x16xf32> to vector<1x4x1x16xf32>
    tpu.strided_store %arg5[%c0_25, %c0_26, %c1_27, %c0_28], %31 {strides = array<i32: 1, 1, 1, 2>} : memref<1x4x16x64xf32, #tpu.memory_space<vmem>>, vector<1x4x1x16xf32>
    %32 = vector.extract_strided_slice %27 {offsets = [4, 0], sizes = [4, 16], strides = [1, 1]} : vector<16x16xf32> to vector<4x16xf32>
    %c0_29 = arith.constant 0 : index
    %c0_30 = arith.constant 0 : index
    %c1_31 = arith.constant 1 : index
    %c1_32 = arith.constant 1 : index
    %33 = tpu.strided_load %arg5[%c0_29, %c0_30, %c1_31, %c1_32] {strides = array<i32: 1, 1, 1, 2>} : memref<1x4x16x64xf32, #tpu.memory_space<vmem>>, vector<1x4x1x16xf32>
    %34 = vector.shape_cast %33 : vector<1x4x1x16xf32> to vector<4x16xf32>
    %35 = vector.shape_cast %32 : vector<4x16xf32> to vector<1x4x1x16xf32>
    tpu.strided_store %arg5[%c0_29, %c0_30, %c1_31, %c1_32], %35 {strides = array<i32: 1, 1, 1, 2>} : memref<1x4x16x64xf32, #tpu.memory_space<vmem>>, vector<1x4x1x16xf32>
    %36 = vector.extract_strided_slice %27 {offsets = [8, 0], sizes = [4, 16], strides = [1, 1]} : vector<16x16xf32> to vector<4x16xf32>
    %c0_33 = arith.constant 0 : index
    %c0_34 = arith.constant 0 : index
    %c1_35 = arith.constant 1 : index
    %c32_36 = arith.constant 32 : index
    %37 = tpu.strided_load %arg5[%c0_33, %c0_34, %c1_35, %c32_36] {strides = array<i32: 1, 1, 1, 2>} : memref<1x4x16x64xf32, #tpu.memory_space<vmem>>, vector<1x4x1x16xf32>
    %38 = vector.shape_cast %37 : vector<1x4x1x16xf32> to vector<4x16xf32>
    %39 = vector.shape_cast %36 : vector<4x16xf32> to vector<1x4x1x16xf32>
    tpu.strided_store %arg5[%c0_33, %c0_34, %c1_35, %c32_36], %39 {strides = array<i32: 1, 1, 1, 2>} : memref<1x4x16x64xf32, #tpu.memory_space<vmem>>, vector<1x4x1x16xf32>
    %40 = vector.extract_strided_slice %27 {offsets = [12, 0], sizes = [4, 16], strides = [1, 1]} : vector<16x16xf32> to vector<4x16xf32>
    %c0_37 = arith.constant 0 : index
    %c0_38 = arith.constant 0 : index
    %c1_39 = arith.constant 1 : index
    %c33_40 = arith.constant 33 : index
    %41 = tpu.strided_load %arg5[%c0_37, %c0_38, %c1_39, %c33_40] {strides = array<i32: 1, 1, 1, 2>} : memref<1x4x16x64xf32, #tpu.memory_space<vmem>>, vector<1x4x1x16xf32>
    %42 = vector.shape_cast %41 : vector<1x4x1x16xf32> to vector<4x16xf32>
    %43 = vector.shape_cast %40 : vector<4x16xf32> to vector<1x4x1x16xf32>
    tpu.strided_store %arg5[%c0_37, %c0_38, %c1_39, %c33_40], %43 {strides = array<i32: 1, 1, 1, 2>} : memref<1x4x16x64xf32, #tpu.memory_space<vmem>>, vector<1x4x1x16xf32>
    %c0_41 = arith.constant 0 : index
    %c0_42 = arith.constant 0 : index
    %c2 = arith.constant 2 : index
    %c0_43 = arith.constant 0 : index
    %44 = vector.load %arg2[%c0_41, %c0_42, %c2, %c0_43] : memref<1x4x16x16xf32, #tpu.memory_space<vmem>>, vector<1x4x1x16xf32>
    %45 = vector.shape_cast %44 : vector<1x4x1x16xf32> to vector<4x16xf32>
    %cst_44 = arith.constant dense<0.000000e+00> : vector<16x16xf32>
    %46 = tpu.matmul %0, %45, %cst_44 {dimension_numbers = #tpu.dot_dimension_numbers<[1], [0], [0], [1], [0, 0, 1, 1], [], []>} : vector<16x4xf32>, vector<4x16xf32>, vector<16x16xf32> -> vector<16x16xf32>
    %47 = vector.broadcast %1 : vector<16x1xf32> to vector<16x16xf32>
    %48 = arith.addf %46, %47 : vector<16x16xf32>
    %49 = vector.extract_strided_slice %48 {offsets = [0, 0], sizes = [4, 16], strides = [1, 1]} : vector<16x16xf32> to vector<4x16xf32>
    %c0_45 = arith.constant 0 : index
    %c0_46 = arith.constant 0 : index
    %c2_47 = arith.constant 2 : index
    %c0_48 = arith.constant 0 : index
    %50 = tpu.strided_load %arg5[%c0_45, %c0_46, %c2_47, %c0_48] {strides = array<i32: 1, 1, 1, 2>} : memref<1x4x16x64xf32, #tpu.memory_space<vmem>>, vector<1x4x1x16xf32>
    %51 = vector.shape_cast %50 : vector<1x4x1x16xf32> to vector<4x16xf32>
    %52 = vector.shape_cast %49 : vector<4x16xf32> to vector<1x4x1x16xf32>
    tpu.strided_store %arg5[%c0_45, %c0_46, %c2_47, %c0_48], %52 {strides = array<i32: 1, 1, 1, 2>} : memref<1x4x16x64xf32, #tpu.memory_space<vmem>>, vector<1x4x1x16xf32>
    %53 = vector.extract_strided_slice %48 {offsets = [4, 0], sizes = [4, 16], strides = [1, 1]} : vector<16x16xf32> to vector<4x16xf32>
    %c0_49 = arith.constant 0 : index
    %c0_50 = arith.constant 0 : index
    %c2_51 = arith.constant 2 : index
    %c1_52 = arith.constant 1 : index
    %54 = tpu.strided_load %arg5[%c0_49, %c0_50, %c2_51, %c1_52] {strides = array<i32: 1, 1, 1, 2>} : memref<1x4x16x64xf32, #tpu.memory_space<vmem>>, vector<1x4x1x16xf32>
    %55 = vector.shape_cast %54 : vector<1x4x1x16xf32> to vector<4x16xf32>
    %56 = vector.shape_cast %53 : vector<4x16xf32> to vector<1x4x1x16xf32>
    tpu.strided_store %arg5[%c0_49, %c0_50, %c2_51, %c1_52], %56 {strides = array<i32: 1, 1, 1, 2>} : memref<1x4x16x64xf32, #tpu.memory_space<vmem>>, vector<1x4x1x16xf32>
    %57 = vector.extract_strided_slice %48 {offsets = [8, 0], sizes = [4, 16], strides = [1, 1]} : vector<16x16xf32> to vector<4x16xf32>
    %c0_53 = arith.constant 0 : index
    %c0_54 = arith.constant 0 : index
    %c2_55 = arith.constant 2 : index
    %c32_56 = arith.constant 32 : index
    %58 = tpu.strided_load %arg5[%c0_53, %c0_54, %c2_55, %c32_56] {strides = array<i32: 1, 1, 1, 2>} : memref<1x4x16x64xf32, #tpu.memory_space<vmem>>, vector<1x4x1x16xf32>
    %59 = vector.shape_cast %58 : vector<1x4x1x16xf32> to vector<4x16xf32>
    %60 = vector.shape_cast %57 : vector<4x16xf32> to vector<1x4x1x16xf32>
    tpu.strided_store %arg5[%c0_53, %c0_54, %c2_55, %c32_56], %60 {strides = array<i32: 1, 1, 1, 2>} : memref<1x4x16x64xf32, #tpu.memory_space<vmem>>, vector<1x4x1x16xf32>
    %61 = vector.extract_strided_slice %48 {offsets = [12, 0], sizes = [4, 16], strides = [1, 1]} : vector<16x16xf32> to vector<4x16xf32>
    %c0_57 = arith.constant 0 : index
    %c0_58 = arith.constant 0 : index
    %c2_59 = arith.constant 2 : index
    %c33_60 = arith.constant 33 : index
    %62 = tpu.strided_load %arg5[%c0_57, %c0_58, %c2_59, %c33_60] {strides = array<i32: 1, 1, 1, 2>} : memref<1x4x16x64xf32, #tpu.memory_space<vmem>>, vector<1x4x1x16xf32>
    %63 = vector.shape_cast %62 : vector<1x4x1x16xf32> to vector<4x16xf32>
    %64 = vector.shape_cast %61 : vector<4x16xf32> to vector<1x4x1x16xf32>
    tpu.strided_store %arg5[%c0_57, %c0_58, %c2_59, %c33_60], %64 {strides = array<i32: 1, 1, 1, 2>} : memref<1x4x16x64xf32, #tpu.memory_space<vmem>>, vector<1x4x1x16xf32>
    %c0_61 = arith.constant 0 : index
    %c0_62 = arith.constant 0 : index
    %c3 = arith.constant 3 : index
    %c0_63 = arith.constant 0 : index
    %65 = vector.load %arg2[%c0_61, %c0_62, %c3, %c0_63] : memref<1x4x16x16xf32, #tpu.memory_space<vmem>>, vector<1x4x1x16xf32>
    %66 = vector.shape_cast %65 : vector<1x4x1x16xf32> to vector<4x16xf32>
    %cst_64 = arith.constant dense<0.000000e+00> : vector<16x16xf32>
    %67 = tpu.matmul %0, %66, %cst_64 {dimension_numbers = #tpu.dot_dimension_numbers<[1], [0], [0], [1], [0, 0, 1, 1], [], []>} : vector<16x4xf32>, vector<4x16xf32>, vector<16x16xf32> -> vector<16x16xf32>
    %68 = vector.broadcast %1 : vector<16x1xf32> to vector<16x16xf32>
    %69 = arith.addf %67, %68 : vector<16x16xf32>
    %70 = vector.extract_strided_slice %69 {offsets = [0, 0], sizes = [4, 16], strides = [1, 1]} : vector<16x16xf32> to vector<4x16xf32>
    %c0_65 = arith.constant 0 : index
    %c0_66 = arith.constant 0 : index
    %c3_67 = arith.constant 3 : index
    %c0_68 = arith.constant 0 : index
    %71 = tpu.strided_load %arg5[%c0_65, %c0_66, %c3_67, %c0_68] {strides = array<i32: 1, 1, 1, 2>} : memref<1x4x16x64xf32, #tpu.memory_space<vmem>>, vector<1x4x1x16xf32>
    %72 = vector.shape_cast %71 : vector<1x4x1x16xf32> to vector<4x16xf32>
    %73 = vector.shape_cast %70 : vector<4x16xf32> to vector<1x4x1x16xf32>
    tpu.strided_store %arg5[%c0_65, %c0_66, %c3_67, %c0_68], %73 {strides = array<i32: 1, 1, 1, 2>} : memref<1x4x16x64xf32, #tpu.memory_space<vmem>>, vector<1x4x1x16xf32>
    %74 = vector.extract_strided_slice %69 {offsets = [4, 0], sizes = [4, 16], strides = [1, 1]} : vector<16x16xf32> to vector<4x16xf32>
    %c0_69 = arith.constant 0 : index
    %c0_70 = arith.constant 0 : index
    %c3_71 = arith.constant 3 : index
    %c1_72 = arith.constant 1 : index
    %75 = tpu.strided_load %arg5[%c0_69, %c0_70, %c3_71, %c1_72] {strides = array<i32: 1, 1, 1, 2>} : memref<1x4x16x64xf32, #tpu.memory_space<vmem>>, vector<1x4x1x16xf32>
    %76 = vector.shape_cast %75 : vector<1x4x1x16xf32> to vector<4x16xf32>
    %77 = vector.shape_cast %74 : vector<4x16xf32> to vector<1x4x1x16xf32>
    tpu.strided_store %arg5[%c0_69, %c0_70, %c3_71, %c1_72], %77 {strides = array<i32: 1, 1, 1, 2>} : memref<1x4x16x64xf32, #tpu.memory_space<vmem>>, vector<1x4x1x16xf32>
    %78 = vector.extract_strided_slice %69 {offsets = [8, 0], sizes = [4, 16], strides = [1, 1]} : vector<16x16xf32> to vector<4x16xf32>
    %c0_73 = arith.constant 0 : index
    %c0_74 = arith.constant 0 : index
    %c3_75 = arith.constant 3 : index
    %c32_76 = arith.constant 32 : index
    %79 = tpu.strided_load %arg5[%c0_73, %c0_74, %c3_75, %c32_76] {strides = array<i32: 1, 1, 1, 2>} : memref<1x4x16x64xf32, #tpu.memory_space<vmem>>, vector<1x4x1x16xf32>
    %80 = vector.shape_cast %79 : vector<1x4x1x16xf32> to vector<4x16xf32>
    %81 = vector.shape_cast %78 : vector<4x16xf32> to vector<1x4x1x16xf32>
    tpu.strided_store %arg5[%c0_73, %c0_74, %c3_75, %c32_76], %81 {strides = array<i32: 1, 1, 1, 2>} : memref<1x4x16x64xf32, #tpu.memory_space<vmem>>, vector<1x4x1x16xf32>
    %82 = vector.extract_strided_slice %69 {offsets = [12, 0], sizes = [4, 16], strides = [1, 1]} : vector<16x16xf32> to vector<4x16xf32>
    %c0_77 = arith.constant 0 : index
    %c0_78 = arith.constant 0 : index
    %c3_79 = arith.constant 3 : index
    %c33_80 = arith.constant 33 : index
    %83 = tpu.strided_load %arg5[%c0_77, %c0_78, %c3_79, %c33_80] {strides = array<i32: 1, 1, 1, 2>} : memref<1x4x16x64xf32, #tpu.memory_space<vmem>>, vector<1x4x1x16xf32>
    %84 = vector.shape_cast %83 : vector<1x4x1x16xf32> to vector<4x16xf32>
    %85 = vector.shape_cast %82 : vector<4x16xf32> to vector<1x4x1x16xf32>
    tpu.strided_store %arg5[%c0_77, %c0_78, %c3_79, %c33_80], %85 {strides = array<i32: 1, 1, 1, 2>} : memref<1x4x16x64xf32, #tpu.memory_space<vmem>>, vector<1x4x1x16xf32>
    %c0_81 = arith.constant 0 : index
    %c0_82 = arith.constant 0 : index
    %c4 = arith.constant 4 : index
    %c0_83 = arith.constant 0 : index
    %86 = vector.load %arg2[%c0_81, %c0_82, %c4, %c0_83] : memref<1x4x16x16xf32, #tpu.memory_space<vmem>>, vector<1x4x1x16xf32>
    %87 = vector.shape_cast %86 : vector<1x4x1x16xf32> to vector<4x16xf32>
    %cst_84 = arith.constant dense<0.000000e+00> : vector<16x16xf32>
    %88 = tpu.matmul %0, %87, %cst_84 {dimension_numbers = #tpu.dot_dimension_numbers<[1], [0], [0], [1], [0, 0, 1, 1], [], []>} : vector<16x4xf32>, vector<4x16xf32>, vector<16x16xf32> -> vector<16x16xf32>
    %89 = vector.broadcast %1 : vector<16x1xf32> to vector<16x16xf32>
    %90 = arith.addf %88, %89 : vector<16x16xf32>
    %91 = vector.extract_strided_slice %90 {offsets = [0, 0], sizes = [4, 16], strides = [1, 1]} : vector<16x16xf32> to vector<4x16xf32>
    %c0_85 = arith.constant 0 : index
    %c0_86 = arith.constant 0 : index
    %c4_87 = arith.constant 4 : index
    %c0_88 = arith.constant 0 : index
    %92 = tpu.strided_load %arg5[%c0_85, %c0_86, %c4_87, %c0_88] {strides = array<i32: 1, 1, 1, 2>} : memref<1x4x16x64xf32, #tpu.memory_space<vmem>>, vector<1x4x1x16xf32>
    %93 = vector.shape_cast %92 : vector<1x4x1x16xf32> to vector<4x16xf32>
    %94 = vector.shape_cast %91 : vector<4x16xf32> to vector<1x4x1x16xf32>
    tpu.strided_store %arg5[%c0_85, %c0_86, %c4_87, %c0_88], %94 {strides = array<i32: 1, 1, 1, 2>} : memref<1x4x16x64xf32, #tpu.memory_space<vmem>>, vector<1x4x1x16xf32>
    %95 = vector.extract_strided_slice %90 {offsets = [4, 0], sizes = [4, 16], strides = [1, 1]} : vector<16x16xf32> to vector<4x16xf32>
    %c0_89 = arith.constant 0 : index
    %c0_90 = arith.constant 0 : index
    %c4_91 = arith.constant 4 : index
    %c1_92 = arith.constant 1 : index
    %96 = tpu.strided_load %arg5[%c0_89, %c0_90, %c4_91, %c1_92] {strides = array<i32: 1, 1, 1, 2>} : memref<1x4x16x64xf32, #tpu.memory_space<vmem>>, vector<1x4x1x16xf32>
    %97 = vector.shape_cast %96 : vector<1x4x1x16xf32> to vector<4x16xf32>
    %98 = vector.shape_cast %95 : vector<4x16xf32> to vector<1x4x1x16xf32>
    tpu.strided_store %arg5[%c0_89, %c0_90, %c4_91, %c1_92], %98 {strides = array<i32: 1, 1, 1, 2>} : memref<1x4x16x64xf32, #tpu.memory_space<vmem>>, vector<1x4x1x16xf32>
    %99 = vector.extract_strided_slice %90 {offsets = [8, 0], sizes = [4, 16], strides = [1, 1]} : vector<16x16xf32> to vector<4x16xf32>
    %c0_93 = arith.constant 0 : index
    %c0_94 = arith.constant 0 : index
    %c4_95 = arith.constant 4 : index
    %c32_96 = arith.constant 32 : index
    %100 = tpu.strided_load %arg5[%c0_93, %c0_94, %c4_95, %c32_96] {strides = array<i32: 1, 1, 1, 2>} : memref<1x4x16x64xf32, #tpu.memory_space<vmem>>, vector<1x4x1x16xf32>
    %101 = vector.shape_cast %100 : vector<1x4x1x16xf32> to vector<4x16xf32>
    %102 = vector.shape_cast %99 : vector<4x16xf32> to vector<1x4x1x16xf32>
    tpu.strided_store %arg5[%c0_93, %c0_94, %c4_95, %c32_96], %102 {strides = array<i32: 1, 1, 1, 2>} : memref<1x4x16x64xf32, #tpu.memory_space<vmem>>, vector<1x4x1x16xf32>
    %103 = vector.extract_strided_slice %90 {offsets = [12, 0], sizes = [4, 16], strides = [1, 1]} : vector<16x16xf32> to vector<4x16xf32>
    %c0_97 = arith.constant 0 : index
    %c0_98 = arith.constant 0 : index
    %c4_99 = arith.constant 4 : index
    %c33_100 = arith.constant 33 : index
    %104 = tpu.strided_load %arg5[%c0_97, %c0_98, %c4_99, %c33_100] {strides = array<i32: 1, 1, 1, 2>} : memref<1x4x16x64xf32, #tpu.memory_space<vmem>>, vector<1x4x1x16xf32>
    %105 = vector.shape_cast %104 : vector<1x4x1x16xf32> to vector<4x16xf32>
    %106 = vector.shape_cast %103 : vector<4x16xf32> to vector<1x4x1x16xf32>
    tpu.strided_store %arg5[%c0_97, %c0_98, %c4_99, %c33_100], %106 {strides = array<i32: 1, 1, 1, 2>} : memref<1x4x16x64xf32, #tpu.memory_space<vmem>>, vector<1x4x1x16xf32>
    %c0_101 = arith.constant 0 : index
    %c0_102 = arith.constant 0 : index
    %c5 = arith.constant 5 : index
    %c0_103 = arith.constant 0 : index
    %107 = vector.load %arg2[%c0_101, %c0_102, %c5, %c0_103] : memref<1x4x16x16xf32, #tpu.memory_space<vmem>>, vector<1x4x1x16xf32>
    %108 = vector.shape_cast %107 : vector<1x4x1x16xf32> to vector<4x16xf32>
    %cst_104 = arith.constant dense<0.000000e+00> : vector<16x16xf32>
    %109 = tpu.matmul %0, %108, %cst_104 {dimension_numbers = #tpu.dot_dimension_numbers<[1], [0], [0], [1], [0, 0, 1, 1], [], []>} : vector<16x4xf32>, vector<4x16xf32>, vector<16x16xf32> -> vector<16x16xf32>
    %110 = vector.broadcast %1 : vector<16x1xf32> to vector<16x16xf32>
    %111 = arith.addf %109, %110 : vector<16x16xf32>
    %112 = vector.extract_strided_slice %111 {offsets = [0, 0], sizes = [4, 16], strides = [1, 1]} : vector<16x16xf32> to vector<4x16xf32>
    %c0_105 = arith.constant 0 : index
    %c0_106 = arith.constant 0 : index
    %c5_107 = arith.constant 5 : index
    %c0_108 = arith.constant 0 : index
    %113 = tpu.strided_load %arg5[%c0_105, %c0_106, %c5_107, %c0_108] {strides = array<i32: 1, 1, 1, 2>} : memref<1x4x16x64xf32, #tpu.memory_space<vmem>>, vector<1x4x1x16xf32>
    %114 = vector.shape_cast %113 : vector<1x4x1x16xf32> to vector<4x16xf32>
    %115 = vector.shape_cast %112 : vector<4x16xf32> to vector<1x4x1x16xf32>
    tpu.strided_store %arg5[%c0_105, %c0_106, %c5_107, %c0_108], %115 {strides = array<i32: 1, 1, 1, 2>} : memref<1x4x16x64xf32, #tpu.memory_space<vmem>>, vector<1x4x1x16xf32>
    %116 = vector.extract_strided_slice %111 {offsets = [4, 0], sizes = [4, 16], strides = [1, 1]} : vector<16x16xf32> to vector<4x16xf32>
    %c0_109 = arith.constant 0 : index
    %c0_110 = arith.constant 0 : index
    %c5_111 = arith.constant 5 : index
    %c1_112 = arith.constant 1 : index
    %117 = tpu.strided_load %arg5[%c0_109, %c0_110, %c5_111, %c1_112] {strides = array<i32: 1, 1, 1, 2>} : memref<1x4x16x64xf32, #tpu.memory_space<vmem>>, vector<1x4x1x16xf32>
    %118 = vector.shape_cast %117 : vector<1x4x1x16xf32> to vector<4x16xf32>
    %119 = vector.shape_cast %116 : vector<4x16xf32> to vector<1x4x1x16xf32>
    tpu.strided_store %arg5[%c0_109, %c0_110, %c5_111, %c1_112], %119 {strides = array<i32: 1, 1, 1, 2>} : memref<1x4x16x64xf32, #tpu.memory_space<vmem>>, vector<1x4x1x16xf32>
    %120 = vector.extract_strided_slice %111 {offsets = [8, 0], sizes = [4, 16], strides = [1, 1]} : vector<16x16xf32> to vector<4x16xf32>
    %c0_113 = arith.constant 0 : index
    %c0_114 = arith.constant 0 : index
    %c5_115 = arith.constant 5 : index
    %c32_116 = arith.constant 32 : index
    %121 = tpu.strided_load %arg5[%c0_113, %c0_114, %c5_115, %c32_116] {strides = array<i32: 1, 1, 1, 2>} : memref<1x4x16x64xf32, #tpu.memory_space<vmem>>, vector<1x4x1x16xf32>
    %122 = vector.shape_cast %121 : vector<1x4x1x16xf32> to vector<4x16xf32>
    %123 = vector.shape_cast %120 : vector<4x16xf32> to vector<1x4x1x16xf32>
    tpu.strided_store %arg5[%c0_113, %c0_114, %c5_115, %c32_116], %123 {strides = array<i32: 1, 1, 1, 2>} : memref<1x4x16x64xf32, #tpu.memory_space<vmem>>, vector<1x4x1x16xf32>
    %124 = vector.extract_strided_slice %111 {offsets = [12, 0], sizes = [4, 16], strides = [1, 1]} : vector<16x16xf32> to vector<4x16xf32>
    %c0_117 = arith.constant 0 : index
    %c0_118 = arith.constant 0 : index
    %c5_119 = arith.constant 5 : index
    %c33_120 = arith.constant 33 : index
    %125 = tpu.strided_load %arg5[%c0_117, %c0_118, %c5_119, %c33_120] {strides = array<i32: 1, 1, 1, 2>} : memref<1x4x16x64xf32, #tpu.memory_space<vmem>>, vector<1x4x1x16xf32>
    %126 = vector.shape_cast %125 : vector<1x4x1x16xf32> to vector<4x16xf32>
    %127 = vector.shape_cast %124 : vector<4x16xf32> to vector<1x4x1x16xf32>
    tpu.strided_store %arg5[%c0_117, %c0_118, %c5_119, %c33_120], %127 {strides = array<i32: 1, 1, 1, 2>} : memref<1x4x16x64xf32, #tpu.memory_space<vmem>>, vector<1x4x1x16xf32>
    %c0_121 = arith.constant 0 : index
    %c0_122 = arith.constant 0 : index
    %c6 = arith.constant 6 : index
    %c0_123 = arith.constant 0 : index
    %128 = vector.load %arg2[%c0_121, %c0_122, %c6, %c0_123] : memref<1x4x16x16xf32, #tpu.memory_space<vmem>>, vector<1x4x1x16xf32>
    %129 = vector.shape_cast %128 : vector<1x4x1x16xf32> to vector<4x16xf32>
    %cst_124 = arith.constant dense<0.000000e+00> : vector<16x16xf32>
    %130 = tpu.matmul %0, %129, %cst_124 {dimension_numbers = #tpu.dot_dimension_numbers<[1], [0], [0], [1], [0, 0, 1, 1], [], []>} : vector<16x4xf32>, vector<4x16xf32>, vector<16x16xf32> -> vector<16x16xf32>
    %131 = vector.broadcast %1 : vector<16x1xf32> to vector<16x16xf32>
    %132 = arith.addf %130, %131 : vector<16x16xf32>
    %133 = vector.extract_strided_slice %132 {offsets = [0, 0], sizes = [4, 16], strides = [1, 1]} : vector<16x16xf32> to vector<4x16xf32>
    %c0_125 = arith.constant 0 : index
    %c0_126 = arith.constant 0 : index
    %c6_127 = arith.constant 6 : index
    %c0_128 = arith.constant 0 : index
    %134 = tpu.strided_load %arg5[%c0_125, %c0_126, %c6_127, %c0_128] {strides = array<i32: 1, 1, 1, 2>} : memref<1x4x16x64xf32, #tpu.memory_space<vmem>>, vector<1x4x1x16xf32>
    %135 = vector.shape_cast %134 : vector<1x4x1x16xf32> to vector<4x16xf32>
    %136 = vector.shape_cast %133 : vector<4x16xf32> to vector<1x4x1x16xf32>
    tpu.strided_store %arg5[%c0_125, %c0_126, %c6_127, %c0_128], %136 {strides = array<i32: 1, 1, 1, 2>} : memref<1x4x16x64xf32, #tpu.memory_space<vmem>>, vector<1x4x1x16xf32>
    %137 = vector.extract_strided_slice %132 {offsets = [4, 0], sizes = [4, 16], strides = [1, 1]} : vector<16x16xf32> to vector<4x16xf32>
    %c0_129 = arith.constant 0 : index
    %c0_130 = arith.constant 0 : index
    %c6_131 = arith.constant 6 : index
    %c1_132 = arith.constant 1 : index
    %138 = tpu.strided_load %arg5[%c0_129, %c0_130, %c6_131, %c1_132] {strides = array<i32: 1, 1, 1, 2>} : memref<1x4x16x64xf32, #tpu.memory_space<vmem>>, vector<1x4x1x16xf32>
    %139 = vector.shape_cast %138 : vector<1x4x1x16xf32> to vector<4x16xf32>
    %140 = vector.shape_cast %137 : vector<4x16xf32> to vector<1x4x1x16xf32>
    tpu.strided_store %arg5[%c0_129, %c0_130, %c6_131, %c1_132], %140 {strides = array<i32: 1, 1, 1, 2>} : memref<1x4x16x64xf32, #tpu.memory_space<vmem>>, vector<1x4x1x16xf32>
    %141 = vector.extract_strided_slice %132 {offsets = [8, 0], sizes = [4, 16], strides = [1, 1]} : vector<16x16xf32> to vector<4x16xf32>
    %c0_133 = arith.constant 0 : index
    %c0_134 = arith.constant 0 : index
    %c6_135 = arith.constant 6 : index
    %c32_136 = arith.constant 32 : index
    %142 = tpu.strided_load %arg5[%c0_133, %c0_134, %c6_135, %c32_136] {strides = array<i32: 1, 1, 1, 2>} : memref<1x4x16x64xf32, #tpu.memory_space<vmem>>, vector<1x4x1x16xf32>
    %143 = vector.shape_cast %142 : vector<1x4x1x16xf32> to vector<4x16xf32>
    %144 = vector.shape_cast %141 : vector<4x16xf32> to vector<1x4x1x16xf32>
    tpu.strided_store %arg5[%c0_133, %c0_134, %c6_135, %c32_136], %144 {strides = array<i32: 1, 1, 1, 2>} : memref<1x4x16x64xf32, #tpu.memory_space<vmem>>, vector<1x4x1x16xf32>
    %145 = vector.extract_strided_slice %132 {offsets = [12, 0], sizes = [4, 16], strides = [1, 1]} : vector<16x16xf32> to vector<4x16xf32>
    %c0_137 = arith.constant 0 : index
    %c0_138 = arith.constant 0 : index
    %c6_139 = arith.constant 6 : index
    %c33_140 = arith.constant 33 : index
    %146 = tpu.strided_load %arg5[%c0_137, %c0_138, %c6_139, %c33_140] {strides = array<i32: 1, 1, 1, 2>} : memref<1x4x16x64xf32, #tpu.memory_space<vmem>>, vector<1x4x1x16xf32>
    %147 = vector.shape_cast %146 : vector<1x4x1x16xf32> to vector<4x16xf32>
    %148 = vector.shape_cast %145 : vector<4x16xf32> to vector<1x4x1x16xf32>
    tpu.strided_store %arg5[%c0_137, %c0_138, %c6_139, %c33_140], %148 {strides = array<i32: 1, 1, 1, 2>} : memref<1x4x16x64xf32, #tpu.memory_space<vmem>>, vector<1x4x1x16xf32>
    %c0_141 = arith.constant 0 : index
    %c0_142 = arith.constant 0 : index
    %c7 = arith.constant 7 : index
    %c0_143 = arith.constant 0 : index
    %149 = vector.load %arg2[%c0_141, %c0_142, %c7, %c0_143] : memref<1x4x16x16xf32, #tpu.memory_space<vmem>>, vector<1x4x1x16xf32>
    %150 = vector.shape_cast %149 : vector<1x4x1x16xf32> to vector<4x16xf32>
    %cst_144 = arith.constant dense<0.000000e+00> : vector<16x16xf32>
    %151 = tpu.matmul %0, %150, %cst_144 {dimension_numbers = #tpu.dot_dimension_numbers<[1], [0], [0], [1], [0, 0, 1, 1], [], []>} : vector<16x4xf32>, vector<4x16xf32>, vector<16x16xf32> -> vector<16x16xf32>
    %152 = vector.broadcast %1 : vector<16x1xf32> to vector<16x16xf32>
    %153 = arith.addf %151, %152 : vector<16x16xf32>
    %154 = vector.extract_strided_slice %153 {offsets = [0, 0], sizes = [4, 16], strides = [1, 1]} : vector<16x16xf32> to vector<4x16xf32>
    %c0_145 = arith.constant 0 : index
    %c0_146 = arith.constant 0 : index
    %c7_147 = arith.constant 7 : index
    %c0_148 = arith.constant 0 : index
    %155 = tpu.strided_load %arg5[%c0_145, %c0_146, %c7_147, %c0_148] {strides = array<i32: 1, 1, 1, 2>} : memref<1x4x16x64xf32, #tpu.memory_space<vmem>>, vector<1x4x1x16xf32>
    %156 = vector.shape_cast %155 : vector<1x4x1x16xf32> to vector<4x16xf32>
    %157 = vector.shape_cast %154 : vector<4x16xf32> to vector<1x4x1x16xf32>
    tpu.strided_store %arg5[%c0_145, %c0_146, %c7_147, %c0_148], %157 {strides = array<i32: 1, 1, 1, 2>} : memref<1x4x16x64xf32, #tpu.memory_space<vmem>>, vector<1x4x1x16xf32>
    %158 = vector.extract_strided_slice %153 {offsets = [4, 0], sizes = [4, 16], strides = [1, 1]} : vector<16x16xf32> to vector<4x16xf32>
    %c0_149 = arith.constant 0 : index
    %c0_150 = arith.constant 0 : index
    %c7_151 = arith.constant 7 : index
    %c1_152 = arith.constant 1 : index
    %159 = tpu.strided_load %arg5[%c0_149, %c0_150, %c7_151, %c1_152] {strides = array<i32: 1, 1, 1, 2>} : memref<1x4x16x64xf32, #tpu.memory_space<vmem>>, vector<1x4x1x16xf32>
    %160 = vector.shape_cast %159 : vector<1x4x1x16xf32> to vector<4x16xf32>
    %161 = vector.shape_cast %158 : vector<4x16xf32> to vector<1x4x1x16xf32>
    tpu.strided_store %arg5[%c0_149, %c0_150, %c7_151, %c1_152], %161 {strides = array<i32: 1, 1, 1, 2>} : memref<1x4x16x64xf32, #tpu.memory_space<vmem>>, vector<1x4x1x16xf32>
    %162 = vector.extract_strided_slice %153 {offsets = [8, 0], sizes = [4, 16], strides = [1, 1]} : vector<16x16xf32> to vector<4x16xf32>
    %c0_153 = arith.constant 0 : index
    %c0_154 = arith.constant 0 : index
    %c7_155 = arith.constant 7 : index
    %c32_156 = arith.constant 32 : index
    %163 = tpu.strided_load %arg5[%c0_153, %c0_154, %c7_155, %c32_156] {strides = array<i32: 1, 1, 1, 2>} : memref<1x4x16x64xf32, #tpu.memory_space<vmem>>, vector<1x4x1x16xf32>
    %164 = vector.shape_cast %163 : vector<1x4x1x16xf32> to vector<4x16xf32>
    %165 = vector.shape_cast %162 : vector<4x16xf32> to vector<1x4x1x16xf32>
    tpu.strided_store %arg5[%c0_153, %c0_154, %c7_155, %c32_156], %165 {strides = array<i32: 1, 1, 1, 2>} : memref<1x4x16x64xf32, #tpu.memory_space<vmem>>, vector<1x4x1x16xf32>
    %166 = vector.extract_strided_slice %153 {offsets = [12, 0], sizes = [4, 16], strides = [1, 1]} : vector<16x16xf32> to vector<4x16xf32>
    %c0_157 = arith.constant 0 : index
    %c0_158 = arith.constant 0 : index
    %c7_159 = arith.constant 7 : index
    %c33_160 = arith.constant 33 : index
    %167 = tpu.strided_load %arg5[%c0_157, %c0_158, %c7_159, %c33_160] {strides = array<i32: 1, 1, 1, 2>} : memref<1x4x16x64xf32, #tpu.memory_space<vmem>>, vector<1x4x1x16xf32>
    %168 = vector.shape_cast %167 : vector<1x4x1x16xf32> to vector<4x16xf32>
    %169 = vector.shape_cast %166 : vector<4x16xf32> to vector<1x4x1x16xf32>
    tpu.strided_store %arg5[%c0_157, %c0_158, %c7_159, %c33_160], %169 {strides = array<i32: 1, 1, 1, 2>} : memref<1x4x16x64xf32, #tpu.memory_space<vmem>>, vector<1x4x1x16xf32>
    %c0_161 = arith.constant 0 : index
    %c0_162 = arith.constant 0 : index
    %c8 = arith.constant 8 : index
    %c0_163 = arith.constant 0 : index
    %170 = vector.load %arg2[%c0_161, %c0_162, %c8, %c0_163] : memref<1x4x16x16xf32, #tpu.memory_space<vmem>>, vector<1x4x1x16xf32>
    %171 = vector.shape_cast %170 : vector<1x4x1x16xf32> to vector<4x16xf32>
    %cst_164 = arith.constant dense<0.000000e+00> : vector<16x16xf32>
    %172 = tpu.matmul %0, %171, %cst_164 {dimension_numbers = #tpu.dot_dimension_numbers<[1], [0], [0], [1], [0, 0, 1, 1], [], []>} : vector<16x4xf32>, vector<4x16xf32>, vector<16x16xf32> -> vector<16x16xf32>
    %173 = vector.broadcast %1 : vector<16x1xf32> to vector<16x16xf32>
    %174 = arith.addf %172, %173 : vector<16x16xf32>
    %175 = vector.extract_strided_slice %174 {offsets = [0, 0], sizes = [4, 16], strides = [1, 1]} : vector<16x16xf32> to vector<4x16xf32>
    %c0_165 = arith.constant 0 : index
    %c0_166 = arith.constant 0 : index
    %c8_167 = arith.constant 8 : index
    %c0_168 = arith.constant 0 : index
    %176 = tpu.strided_load %arg5[%c0_165, %c0_166, %c8_167, %c0_168] {strides = array<i32: 1, 1, 1, 2>} : memref<1x4x16x64xf32, #tpu.memory_space<vmem>>, vector<1x4x1x16xf32>
    %177 = vector.shape_cast %176 : vector<1x4x1x16xf32> to vector<4x16xf32>
    %178 = vector.shape_cast %175 : vector<4x16xf32> to vector<1x4x1x16xf32>
    tpu.strided_store %arg5[%c0_165, %c0_166, %c8_167, %c0_168], %178 {strides = array<i32: 1, 1, 1, 2>} : memref<1x4x16x64xf32, #tpu.memory_space<vmem>>, vector<1x4x1x16xf32>
    %179 = vector.extract_strided_slice %174 {offsets = [4, 0], sizes = [4, 16], strides = [1, 1]} : vector<16x16xf32> to vector<4x16xf32>
    %c0_169 = arith.constant 0 : index
    %c0_170 = arith.constant 0 : index
    %c8_171 = arith.constant 8 : index
    %c1_172 = arith.constant 1 : index
    %180 = tpu.strided_load %arg5[%c0_169, %c0_170, %c8_171, %c1_172] {strides = array<i32: 1, 1, 1, 2>} : memref<1x4x16x64xf32, #tpu.memory_space<vmem>>, vector<1x4x1x16xf32>
    %181 = vector.shape_cast %180 : vector<1x4x1x16xf32> to vector<4x16xf32>
    %182 = vector.shape_cast %179 : vector<4x16xf32> to vector<1x4x1x16xf32>
    tpu.strided_store %arg5[%c0_169, %c0_170, %c8_171, %c1_172], %182 {strides = array<i32: 1, 1, 1, 2>} : memref<1x4x16x64xf32, #tpu.memory_space<vmem>>, vector<1x4x1x16xf32>
    %183 = vector.extract_strided_slice %174 {offsets = [8, 0], sizes = [4, 16], strides = [1, 1]} : vector<16x16xf32> to vector<4x16xf32>
    %c0_173 = arith.constant 0 : index
    %c0_174 = arith.constant 0 : index
    %c8_175 = arith.constant 8 : index
    %c32_176 = arith.constant 32 : index
    %184 = tpu.strided_load %arg5[%c0_173, %c0_174, %c8_175, %c32_176] {strides = array<i32: 1, 1, 1, 2>} : memref<1x4x16x64xf32, #tpu.memory_space<vmem>>, vector<1x4x1x16xf32>
    %185 = vector.shape_cast %184 : vector<1x4x1x16xf32> to vector<4x16xf32>
    %186 = vector.shape_cast %183 : vector<4x16xf32> to vector<1x4x1x16xf32>
    tpu.strided_store %arg5[%c0_173, %c0_174, %c8_175, %c32_176], %186 {strides = array<i32: 1, 1, 1, 2>} : memref<1x4x16x64xf32, #tpu.memory_space<vmem>>, vector<1x4x1x16xf32>
    %187 = vector.extract_strided_slice %174 {offsets = [12, 0], sizes = [4, 16], strides = [1, 1]} : vector<16x16xf32> to vector<4x16xf32>
    %c0_177 = arith.constant 0 : index
    %c0_178 = arith.constant 0 : index
    %c8_179 = arith.constant 8 : index
    %c33_180 = arith.constant 33 : index
    %188 = tpu.strided_load %arg5[%c0_177, %c0_178, %c8_179, %c33_180] {strides = array<i32: 1, 1, 1, 2>} : memref<1x4x16x64xf32, #tpu.memory_space<vmem>>, vector<1x4x1x16xf32>
    %189 = vector.shape_cast %188 : vector<1x4x1x16xf32> to vector<4x16xf32>
    %190 = vector.shape_cast %187 : vector<4x16xf32> to vector<1x4x1x16xf32>
    tpu.strided_store %arg5[%c0_177, %c0_178, %c8_179, %c33_180], %190 {strides = array<i32: 1, 1, 1, 2>} : memref<1x4x16x64xf32, #tpu.memory_space<vmem>>, vector<1x4x1x16xf32>
    %c0_181 = arith.constant 0 : index
    %c0_182 = arith.constant 0 : index
    %c9 = arith.constant 9 : index
    %c0_183 = arith.constant 0 : index
    %191 = vector.load %arg2[%c0_181, %c0_182, %c9, %c0_183] : memref<1x4x16x16xf32, #tpu.memory_space<vmem>>, vector<1x4x1x16xf32>
    %192 = vector.shape_cast %191 : vector<1x4x1x16xf32> to vector<4x16xf32>
    %cst_184 = arith.constant dense<0.000000e+00> : vector<16x16xf32>
    %193 = tpu.matmul %0, %192, %cst_184 {dimension_numbers = #tpu.dot_dimension_numbers<[1], [0], [0], [1], [0, 0, 1, 1], [], []>} : vector<16x4xf32>, vector<4x16xf32>, vector<16x16xf32> -> vector<16x16xf32>
    %194 = vector.broadcast %1 : vector<16x1xf32> to vector<16x16xf32>
    %195 = arith.addf %193, %194 : vector<16x16xf32>
    %196 = vector.extract_strided_slice %195 {offsets = [0, 0], sizes = [4, 16], strides = [1, 1]} : vector<16x16xf32> to vector<4x16xf32>
    %c0_185 = arith.constant 0 : index
    %c0_186 = arith.constant 0 : index
    %c9_187 = arith.constant 9 : index
    %c0_188 = arith.constant 0 : index
    %197 = tpu.strided_load %arg5[%c0_185, %c0_186, %c9_187, %c0_188] {strides = array<i32: 1, 1, 1, 2>} : memref<1x4x16x64xf32, #tpu.memory_space<vmem>>, vector<1x4x1x16xf32>
    %198 = vector.shape_cast %197 : vector<1x4x1x16xf32> to vector<4x16xf32>
    %199 = vector.shape_cast %196 : vector<4x16xf32> to vector<1x4x1x16xf32>
    tpu.strided_store %arg5[%c0_185, %c0_186, %c9_187, %c0_188], %199 {strides = array<i32: 1, 1, 1, 2>} : memref<1x4x16x64xf32, #tpu.memory_space<vmem>>, vector<1x4x1x16xf32>
    %200 = vector.extract_strided_slice %195 {offsets = [4, 0], sizes = [4, 16], strides = [1, 1]} : vector<16x16xf32> to vector<4x16xf32>
    %c0_189 = arith.constant 0 : index
    %c0_190 = arith.constant 0 : index
    %c9_191 = arith.constant 9 : index
    %c1_192 = arith.constant 1 : index
    %201 = tpu.strided_load %arg5[%c0_189, %c0_190, %c9_191, %c1_192] {strides = array<i32: 1, 1, 1, 2>} : memref<1x4x16x64xf32, #tpu.memory_space<vmem>>, vector<1x4x1x16xf32>
    %202 = vector.shape_cast %201 : vector<1x4x1x16xf32> to vector<4x16xf32>
    %203 = vector.shape_cast %200 : vector<4x16xf32> to vector<1x4x1x16xf32>
    tpu.strided_store %arg5[%c0_189, %c0_190, %c9_191, %c1_192], %203 {strides = array<i32: 1, 1, 1, 2>} : memref<1x4x16x64xf32, #tpu.memory_space<vmem>>, vector<1x4x1x16xf32>
    %204 = vector.extract_strided_slice %195 {offsets = [8, 0], sizes = [4, 16], strides = [1, 1]} : vector<16x16xf32> to vector<4x16xf32>
    %c0_193 = arith.constant 0 : index
    %c0_194 = arith.constant 0 : index
    %c9_195 = arith.constant 9 : index
    %c32_196 = arith.constant 32 : index
    %205 = tpu.strided_load %arg5[%c0_193, %c0_194, %c9_195, %c32_196] {strides = array<i32: 1, 1, 1, 2>} : memref<1x4x16x64xf32, #tpu.memory_space<vmem>>, vector<1x4x1x16xf32>
    %206 = vector.shape_cast %205 : vector<1x4x1x16xf32> to vector<4x16xf32>
    %207 = vector.shape_cast %204 : vector<4x16xf32> to vector<1x4x1x16xf32>
    tpu.strided_store %arg5[%c0_193, %c0_194, %c9_195, %c32_196], %207 {strides = array<i32: 1, 1, 1, 2>} : memref<1x4x16x64xf32, #tpu.memory_space<vmem>>, vector<1x4x1x16xf32>
    %208 = vector.extract_strided_slice %195 {offsets = [12, 0], sizes = [4, 16], strides = [1, 1]} : vector<16x16xf32> to vector<4x16xf32>
    %c0_197 = arith.constant 0 : index
    %c0_198 = arith.constant 0 : index
    %c9_199 = arith.constant 9 : index
    %c33_200 = arith.constant 33 : index
    %209 = tpu.strided_load %arg5[%c0_197, %c0_198, %c9_199, %c33_200] {strides = array<i32: 1, 1, 1, 2>} : memref<1x4x16x64xf32, #tpu.memory_space<vmem>>, vector<1x4x1x16xf32>
    %210 = vector.shape_cast %209 : vector<1x4x1x16xf32> to vector<4x16xf32>
    %211 = vector.shape_cast %208 : vector<4x16xf32> to vector<1x4x1x16xf32>
    tpu.strided_store %arg5[%c0_197, %c0_198, %c9_199, %c33_200], %211 {strides = array<i32: 1, 1, 1, 2>} : memref<1x4x16x64xf32, #tpu.memory_space<vmem>>, vector<1x4x1x16xf32>
    %c0_201 = arith.constant 0 : index
    %c0_202 = arith.constant 0 : index
    %c10 = arith.constant 10 : index
    %c0_203 = arith.constant 0 : index
    %212 = vector.load %arg2[%c0_201, %c0_202, %c10, %c0_203] : memref<1x4x16x16xf32, #tpu.memory_space<vmem>>, vector<1x4x1x16xf32>
    %213 = vector.shape_cast %212 : vector<1x4x1x16xf32> to vector<4x16xf32>
    %cst_204 = arith.constant dense<0.000000e+00> : vector<16x16xf32>
    %214 = tpu.matmul %0, %213, %cst_204 {dimension_numbers = #tpu.dot_dimension_numbers<[1], [0], [0], [1], [0, 0, 1, 1], [], []>} : vector<16x4xf32>, vector<4x16xf32>, vector<16x16xf32> -> vector<16x16xf32>
    %215 = vector.broadcast %1 : vector<16x1xf32> to vector<16x16xf32>
    %216 = arith.addf %214, %215 : vector<16x16xf32>
    %217 = vector.extract_strided_slice %216 {offsets = [0, 0], sizes = [4, 16], strides = [1, 1]} : vector<16x16xf32> to vector<4x16xf32>
    %c0_205 = arith.constant 0 : index
    %c0_206 = arith.constant 0 : index
    %c10_207 = arith.constant 10 : index
    %c0_208 = arith.constant 0 : index
    %218 = tpu.strided_load %arg5[%c0_205, %c0_206, %c10_207, %c0_208] {strides = array<i32: 1, 1, 1, 2>} : memref<1x4x16x64xf32, #tpu.memory_space<vmem>>, vector<1x4x1x16xf32>
    %219 = vector.shape_cast %218 : vector<1x4x1x16xf32> to vector<4x16xf32>
    %220 = vector.shape_cast %217 : vector<4x16xf32> to vector<1x4x1x16xf32>
    tpu.strided_store %arg5[%c0_205, %c0_206, %c10_207, %c0_208], %220 {strides = array<i32: 1, 1, 1, 2>} : memref<1x4x16x64xf32, #tpu.memory_space<vmem>>, vector<1x4x1x16xf32>
    %221 = vector.extract_strided_slice %216 {offsets = [4, 0], sizes = [4, 16], strides = [1, 1]} : vector<16x16xf32> to vector<4x16xf32>
    %c0_209 = arith.constant 0 : index
    %c0_210 = arith.constant 0 : index
    %c10_211 = arith.constant 10 : index
    %c1_212 = arith.constant 1 : index
    %222 = tpu.strided_load %arg5[%c0_209, %c0_210, %c10_211, %c1_212] {strides = array<i32: 1, 1, 1, 2>} : memref<1x4x16x64xf32, #tpu.memory_space<vmem>>, vector<1x4x1x16xf32>
    %223 = vector.shape_cast %222 : vector<1x4x1x16xf32> to vector<4x16xf32>
    %224 = vector.shape_cast %221 : vector<4x16xf32> to vector<1x4x1x16xf32>
    tpu.strided_store %arg5[%c0_209, %c0_210, %c10_211, %c1_212], %224 {strides = array<i32: 1, 1, 1, 2>} : memref<1x4x16x64xf32, #tpu.memory_space<vmem>>, vector<1x4x1x16xf32>
    %225 = vector.extract_strided_slice %216 {offsets = [8, 0], sizes = [4, 16], strides = [1, 1]} : vector<16x16xf32> to vector<4x16xf32>
    %c0_213 = arith.constant 0 : index
    %c0_214 = arith.constant 0 : index
    %c10_215 = arith.constant 10 : index
    %c32_216 = arith.constant 32 : index
    %226 = tpu.strided_load %arg5[%c0_213, %c0_214, %c10_215, %c32_216] {strides = array<i32: 1, 1, 1, 2>} : memref<1x4x16x64xf32, #tpu.memory_space<vmem>>, vector<1x4x1x16xf32>
    %227 = vector.shape_cast %226 : vector<1x4x1x16xf32> to vector<4x16xf32>
    %228 = vector.shape_cast %225 : vector<4x16xf32> to vector<1x4x1x16xf32>
    tpu.strided_store %arg5[%c0_213, %c0_214, %c10_215, %c32_216], %228 {strides = array<i32: 1, 1, 1, 2>} : memref<1x4x16x64xf32, #tpu.memory_space<vmem>>, vector<1x4x1x16xf32>
    %229 = vector.extract_strided_slice %216 {offsets = [12, 0], sizes = [4, 16], strides = [1, 1]} : vector<16x16xf32> to vector<4x16xf32>
    %c0_217 = arith.constant 0 : index
    %c0_218 = arith.constant 0 : index
    %c10_219 = arith.constant 10 : index
    %c33_220 = arith.constant 33 : index
    %230 = tpu.strided_load %arg5[%c0_217, %c0_218, %c10_219, %c33_220] {strides = array<i32: 1, 1, 1, 2>} : memref<1x4x16x64xf32, #tpu.memory_space<vmem>>, vector<1x4x1x16xf32>
    %231 = vector.shape_cast %230 : vector<1x4x1x16xf32> to vector<4x16xf32>
    %232 = vector.shape_cast %229 : vector<4x16xf32> to vector<1x4x1x16xf32>
    tpu.strided_store %arg5[%c0_217, %c0_218, %c10_219, %c33_220], %232 {strides = array<i32: 1, 1, 1, 2>} : memref<1x4x16x64xf32, #tpu.memory_space<vmem>>, vector<1x4x1x16xf32>
    %c0_221 = arith.constant 0 : index
    %c0_222 = arith.constant 0 : index
    %c11 = arith.constant 11 : index
    %c0_223 = arith.constant 0 : index
    %233 = vector.load %arg2[%c0_221, %c0_222, %c11, %c0_223] : memref<1x4x16x16xf32, #tpu.memory_space<vmem>>, vector<1x4x1x16xf32>
    %234 = vector.shape_cast %233 : vector<1x4x1x16xf32> to vector<4x16xf32>
    %cst_224 = arith.constant dense<0.000000e+00> : vector<16x16xf32>
    %235 = tpu.matmul %0, %234, %cst_224 {dimension_numbers = #tpu.dot_dimension_numbers<[1], [0], [0], [1], [0, 0, 1, 1], [], []>} : vector<16x4xf32>, vector<4x16xf32>, vector<16x16xf32> -> vector<16x16xf32>
    %236 = vector.broadcast %1 : vector<16x1xf32> to vector<16x16xf32>
    %237 = arith.addf %235, %236 : vector<16x16xf32>
    %238 = vector.extract_strided_slice %237 {offsets = [0, 0], sizes = [4, 16], strides = [1, 1]} : vector<16x16xf32> to vector<4x16xf32>
    %c0_225 = arith.constant 0 : index
    %c0_226 = arith.constant 0 : index
    %c11_227 = arith.constant 11 : index
    %c0_228 = arith.constant 0 : index
    %239 = tpu.strided_load %arg5[%c0_225, %c0_226, %c11_227, %c0_228] {strides = array<i32: 1, 1, 1, 2>} : memref<1x4x16x64xf32, #tpu.memory_space<vmem>>, vector<1x4x1x16xf32>
    %240 = vector.shape_cast %239 : vector<1x4x1x16xf32> to vector<4x16xf32>
    %241 = vector.shape_cast %238 : vector<4x16xf32> to vector<1x4x1x16xf32>
    tpu.strided_store %arg5[%c0_225, %c0_226, %c11_227, %c0_228], %241 {strides = array<i32: 1, 1, 1, 2>} : memref<1x4x16x64xf32, #tpu.memory_space<vmem>>, vector<1x4x1x16xf32>
    %242 = vector.extract_strided_slice %237 {offsets = [4, 0], sizes = [4, 16], strides = [1, 1]} : vector<16x16xf32> to vector<4x16xf32>
    %c0_229 = arith.constant 0 : index
    %c0_230 = arith.constant 0 : index
    %c11_231 = arith.constant 11 : index
    %c1_232 = arith.constant 1 : index
    %243 = tpu.strided_load %arg5[%c0_229, %c0_230, %c11_231, %c1_232] {strides = array<i32: 1, 1, 1, 2>} : memref<1x4x16x64xf32, #tpu.memory_space<vmem>>, vector<1x4x1x16xf32>
    %244 = vector.shape_cast %243 : vector<1x4x1x16xf32> to vector<4x16xf32>
    %245 = vector.shape_cast %242 : vector<4x16xf32> to vector<1x4x1x16xf32>
    tpu.strided_store %arg5[%c0_229, %c0_230, %c11_231, %c1_232], %245 {strides = array<i32: 1, 1, 1, 2>} : memref<1x4x16x64xf32, #tpu.memory_space<vmem>>, vector<1x4x1x16xf32>
    %246 = vector.extract_strided_slice %237 {offsets = [8, 0], sizes = [4, 16], strides = [1, 1]} : vector<16x16xf32> to vector<4x16xf32>
    %c0_233 = arith.constant 0 : index
    %c0_234 = arith.constant 0 : index
    %c11_235 = arith.constant 11 : index
    %c32_236 = arith.constant 32 : index
    %247 = tpu.strided_load %arg5[%c0_233, %c0_234, %c11_235, %c32_236] {strides = array<i32: 1, 1, 1, 2>} : memref<1x4x16x64xf32, #tpu.memory_space<vmem>>, vector<1x4x1x16xf32>
    %248 = vector.shape_cast %247 : vector<1x4x1x16xf32> to vector<4x16xf32>
    %249 = vector.shape_cast %246 : vector<4x16xf32> to vector<1x4x1x16xf32>
    tpu.strided_store %arg5[%c0_233, %c0_234, %c11_235, %c32_236], %249 {strides = array<i32: 1, 1, 1, 2>} : memref<1x4x16x64xf32, #tpu.memory_space<vmem>>, vector<1x4x1x16xf32>
    %250 = vector.extract_strided_slice %237 {offsets = [12, 0], sizes = [4, 16], strides = [1, 1]} : vector<16x16xf32> to vector<4x16xf32>
    %c0_237 = arith.constant 0 : index
    %c0_238 = arith.constant 0 : index
    %c11_239 = arith.constant 11 : index
    %c33_240 = arith.constant 33 : index
    %251 = tpu.strided_load %arg5[%c0_237, %c0_238, %c11_239, %c33_240] {strides = array<i32: 1, 1, 1, 2>} : memref<1x4x16x64xf32, #tpu.memory_space<vmem>>, vector<1x4x1x16xf32>
    %252 = vector.shape_cast %251 : vector<1x4x1x16xf32> to vector<4x16xf32>
    %253 = vector.shape_cast %250 : vector<4x16xf32> to vector<1x4x1x16xf32>
    tpu.strided_store %arg5[%c0_237, %c0_238, %c11_239, %c33_240], %253 {strides = array<i32: 1, 1, 1, 2>} : memref<1x4x16x64xf32, #tpu.memory_space<vmem>>, vector<1x4x1x16xf32>
    %c0_241 = arith.constant 0 : index
    %c0_242 = arith.constant 0 : index
    %c12 = arith.constant 12 : index
    %c0_243 = arith.constant 0 : index
    %254 = vector.load %arg2[%c0_241, %c0_242, %c12, %c0_243] : memref<1x4x16x16xf32, #tpu.memory_space<vmem>>, vector<1x4x1x16xf32>
    %255 = vector.shape_cast %254 : vector<1x4x1x16xf32> to vector<4x16xf32>
    %cst_244 = arith.constant dense<0.000000e+00> : vector<16x16xf32>
    %256 = tpu.matmul %0, %255, %cst_244 {dimension_numbers = #tpu.dot_dimension_numbers<[1], [0], [0], [1], [0, 0, 1, 1], [], []>} : vector<16x4xf32>, vector<4x16xf32>, vector<16x16xf32> -> vector<16x16xf32>
    %257 = vector.broadcast %1 : vector<16x1xf32> to vector<16x16xf32>
    %258 = arith.addf %256, %257 : vector<16x16xf32>
    %259 = vector.extract_strided_slice %258 {offsets = [0, 0], sizes = [4, 16], strides = [1, 1]} : vector<16x16xf32> to vector<4x16xf32>
    %c0_245 = arith.constant 0 : index
    %c0_246 = arith.constant 0 : index
    %c12_247 = arith.constant 12 : index
    %c0_248 = arith.constant 0 : index
    %260 = tpu.strided_load %arg5[%c0_245, %c0_246, %c12_247, %c0_248] {strides = array<i32: 1, 1, 1, 2>} : memref<1x4x16x64xf32, #tpu.memory_space<vmem>>, vector<1x4x1x16xf32>
    %261 = vector.shape_cast %260 : vector<1x4x1x16xf32> to vector<4x16xf32>
    %262 = vector.shape_cast %259 : vector<4x16xf32> to vector<1x4x1x16xf32>
    tpu.strided_store %arg5[%c0_245, %c0_246, %c12_247, %c0_248], %262 {strides = array<i32: 1, 1, 1, 2>} : memref<1x4x16x64xf32, #tpu.memory_space<vmem>>, vector<1x4x1x16xf32>
    %263 = vector.extract_strided_slice %258 {offsets = [4, 0], sizes = [4, 16], strides = [1, 1]} : vector<16x16xf32> to vector<4x16xf32>
    %c0_249 = arith.constant 0 : index
    %c0_250 = arith.constant 0 : index
    %c12_251 = arith.constant 12 : index
    %c1_252 = arith.constant 1 : index
    %264 = tpu.strided_load %arg5[%c0_249, %c0_250, %c12_251, %c1_252] {strides = array<i32: 1, 1, 1, 2>} : memref<1x4x16x64xf32, #tpu.memory_space<vmem>>, vector<1x4x1x16xf32>
    %265 = vector.shape_cast %264 : vector<1x4x1x16xf32> to vector<4x16xf32>
    %266 = vector.shape_cast %263 : vector<4x16xf32> to vector<1x4x1x16xf32>
    tpu.strided_store %arg5[%c0_249, %c0_250, %c12_251, %c1_252], %266 {strides = array<i32: 1, 1, 1, 2>} : memref<1x4x16x64xf32, #tpu.memory_space<vmem>>, vector<1x4x1x16xf32>
    %267 = vector.extract_strided_slice %258 {offsets = [8, 0], sizes = [4, 16], strides = [1, 1]} : vector<16x16xf32> to vector<4x16xf32>
    %c0_253 = arith.constant 0 : index
    %c0_254 = arith.constant 0 : index
    %c12_255 = arith.constant 12 : index
    %c32_256 = arith.constant 32 : index
    %268 = tpu.strided_load %arg5[%c0_253, %c0_254, %c12_255, %c32_256] {strides = array<i32: 1, 1, 1, 2>} : memref<1x4x16x64xf32, #tpu.memory_space<vmem>>, vector<1x4x1x16xf32>
    %269 = vector.shape_cast %268 : vector<1x4x1x16xf32> to vector<4x16xf32>
    %270 = vector.shape_cast %267 : vector<4x16xf32> to vector<1x4x1x16xf32>
    tpu.strided_store %arg5[%c0_253, %c0_254, %c12_255, %c32_256], %270 {strides = array<i32: 1, 1, 1, 2>} : memref<1x4x16x64xf32, #tpu.memory_space<vmem>>, vector<1x4x1x16xf32>
    %271 = vector.extract_strided_slice %258 {offsets = [12, 0], sizes = [4, 16], strides = [1, 1]} : vector<16x16xf32> to vector<4x16xf32>
    %c0_257 = arith.constant 0 : index
    %c0_258 = arith.constant 0 : index
    %c12_259 = arith.constant 12 : index
    %c33_260 = arith.constant 33 : index
    %272 = tpu.strided_load %arg5[%c0_257, %c0_258, %c12_259, %c33_260] {strides = array<i32: 1, 1, 1, 2>} : memref<1x4x16x64xf32, #tpu.memory_space<vmem>>, vector<1x4x1x16xf32>
    %273 = vector.shape_cast %272 : vector<1x4x1x16xf32> to vector<4x16xf32>
    %274 = vector.shape_cast %271 : vector<4x16xf32> to vector<1x4x1x16xf32>
    tpu.strided_store %arg5[%c0_257, %c0_258, %c12_259, %c33_260], %274 {strides = array<i32: 1, 1, 1, 2>} : memref<1x4x16x64xf32, #tpu.memory_space<vmem>>, vector<1x4x1x16xf32>
    %c0_261 = arith.constant 0 : index
    %c0_262 = arith.constant 0 : index
    %c13 = arith.constant 13 : index
    %c0_263 = arith.constant 0 : index
    %275 = vector.load %arg2[%c0_261, %c0_262, %c13, %c0_263] : memref<1x4x16x16xf32, #tpu.memory_space<vmem>>, vector<1x4x1x16xf32>
    %276 = vector.shape_cast %275 : vector<1x4x1x16xf32> to vector<4x16xf32>
    %cst_264 = arith.constant dense<0.000000e+00> : vector<16x16xf32>
    %277 = tpu.matmul %0, %276, %cst_264 {dimension_numbers = #tpu.dot_dimension_numbers<[1], [0], [0], [1], [0, 0, 1, 1], [], []>} : vector<16x4xf32>, vector<4x16xf32>, vector<16x16xf32> -> vector<16x16xf32>
    %278 = vector.broadcast %1 : vector<16x1xf32> to vector<16x16xf32>
    %279 = arith.addf %277, %278 : vector<16x16xf32>
    %280 = vector.extract_strided_slice %279 {offsets = [0, 0], sizes = [4, 16], strides = [1, 1]} : vector<16x16xf32> to vector<4x16xf32>
    %c0_265 = arith.constant 0 : index
    %c0_266 = arith.constant 0 : index
    %c13_267 = arith.constant 13 : index
    %c0_268 = arith.constant 0 : index
    %281 = tpu.strided_load %arg5[%c0_265, %c0_266, %c13_267, %c0_268] {strides = array<i32: 1, 1, 1, 2>} : memref<1x4x16x64xf32, #tpu.memory_space<vmem>>, vector<1x4x1x16xf32>
    %282 = vector.shape_cast %281 : vector<1x4x1x16xf32> to vector<4x16xf32>
    %283 = vector.shape_cast %280 : vector<4x16xf32> to vector<1x4x1x16xf32>
    tpu.strided_store %arg5[%c0_265, %c0_266, %c13_267, %c0_268], %283 {strides = array<i32: 1, 1, 1, 2>} : memref<1x4x16x64xf32, #tpu.memory_space<vmem>>, vector<1x4x1x16xf32>
    %284 = vector.extract_strided_slice %279 {offsets = [4, 0], sizes = [4, 16], strides = [1, 1]} : vector<16x16xf32> to vector<4x16xf32>
    %c0_269 = arith.constant 0 : index
    %c0_270 = arith.constant 0 : index
    %c13_271 = arith.constant 13 : index
    %c1_272 = arith.constant 1 : index
    %285 = tpu.strided_load %arg5[%c0_269, %c0_270, %c13_271, %c1_272] {strides = array<i32: 1, 1, 1, 2>} : memref<1x4x16x64xf32, #tpu.memory_space<vmem>>, vector<1x4x1x16xf32>
    %286 = vector.shape_cast %285 : vector<1x4x1x16xf32> to vector<4x16xf32>
    %287 = vector.shape_cast %284 : vector<4x16xf32> to vector<1x4x1x16xf32>
    tpu.strided_store %arg5[%c0_269, %c0_270, %c13_271, %c1_272], %287 {strides = array<i32: 1, 1, 1, 2>} : memref<1x4x16x64xf32, #tpu.memory_space<vmem>>, vector<1x4x1x16xf32>
    %288 = vector.extract_strided_slice %279 {offsets = [8, 0], sizes = [4, 16], strides = [1, 1]} : vector<16x16xf32> to vector<4x16xf32>
    %c0_273 = arith.constant 0 : index
    %c0_274 = arith.constant 0 : index
    %c13_275 = arith.constant 13 : index
    %c32_276 = arith.constant 32 : index
    %289 = tpu.strided_load %arg5[%c0_273, %c0_274, %c13_275, %c32_276] {strides = array<i32: 1, 1, 1, 2>} : memref<1x4x16x64xf32, #tpu.memory_space<vmem>>, vector<1x4x1x16xf32>
    %290 = vector.shape_cast %289 : vector<1x4x1x16xf32> to vector<4x16xf32>
    %291 = vector.shape_cast %288 : vector<4x16xf32> to vector<1x4x1x16xf32>
    tpu.strided_store %arg5[%c0_273, %c0_274, %c13_275, %c32_276], %291 {strides = array<i32: 1, 1, 1, 2>} : memref<1x4x16x64xf32, #tpu.memory_space<vmem>>, vector<1x4x1x16xf32>
    %292 = vector.extract_strided_slice %279 {offsets = [12, 0], sizes = [4, 16], strides = [1, 1]} : vector<16x16xf32> to vector<4x16xf32>
    %c0_277 = arith.constant 0 : index
    %c0_278 = arith.constant 0 : index
    %c13_279 = arith.constant 13 : index
    %c33_280 = arith.constant 33 : index
    %293 = tpu.strided_load %arg5[%c0_277, %c0_278, %c13_279, %c33_280] {strides = array<i32: 1, 1, 1, 2>} : memref<1x4x16x64xf32, #tpu.memory_space<vmem>>, vector<1x4x1x16xf32>
    %294 = vector.shape_cast %293 : vector<1x4x1x16xf32> to vector<4x16xf32>
    %295 = vector.shape_cast %292 : vector<4x16xf32> to vector<1x4x1x16xf32>
    tpu.strided_store %arg5[%c0_277, %c0_278, %c13_279, %c33_280], %295 {strides = array<i32: 1, 1, 1, 2>} : memref<1x4x16x64xf32, #tpu.memory_space<vmem>>, vector<1x4x1x16xf32>
    %c0_281 = arith.constant 0 : index
    %c0_282 = arith.constant 0 : index
    %c14 = arith.constant 14 : index
    %c0_283 = arith.constant 0 : index
    %296 = vector.load %arg2[%c0_281, %c0_282, %c14, %c0_283] : memref<1x4x16x16xf32, #tpu.memory_space<vmem>>, vector<1x4x1x16xf32>
    %297 = vector.shape_cast %296 : vector<1x4x1x16xf32> to vector<4x16xf32>
    %cst_284 = arith.constant dense<0.000000e+00> : vector<16x16xf32>
    %298 = tpu.matmul %0, %297, %cst_284 {dimension_numbers = #tpu.dot_dimension_numbers<[1], [0], [0], [1], [0, 0, 1, 1], [], []>} : vector<16x4xf32>, vector<4x16xf32>, vector<16x16xf32> -> vector<16x16xf32>
    %299 = vector.broadcast %1 : vector<16x1xf32> to vector<16x16xf32>
    %300 = arith.addf %298, %299 : vector<16x16xf32>
    %301 = vector.extract_strided_slice %300 {offsets = [0, 0], sizes = [4, 16], strides = [1, 1]} : vector<16x16xf32> to vector<4x16xf32>
    %c0_285 = arith.constant 0 : index
    %c0_286 = arith.constant 0 : index
    %c14_287 = arith.constant 14 : index
    %c0_288 = arith.constant 0 : index
    %302 = tpu.strided_load %arg5[%c0_285, %c0_286, %c14_287, %c0_288] {strides = array<i32: 1, 1, 1, 2>} : memref<1x4x16x64xf32, #tpu.memory_space<vmem>>, vector<1x4x1x16xf32>
    %303 = vector.shape_cast %302 : vector<1x4x1x16xf32> to vector<4x16xf32>
    %304 = vector.shape_cast %301 : vector<4x16xf32> to vector<1x4x1x16xf32>
    tpu.strided_store %arg5[%c0_285, %c0_286, %c14_287, %c0_288], %304 {strides = array<i32: 1, 1, 1, 2>} : memref<1x4x16x64xf32, #tpu.memory_space<vmem>>, vector<1x4x1x16xf32>
    %305 = vector.extract_strided_slice %300 {offsets = [4, 0], sizes = [4, 16], strides = [1, 1]} : vector<16x16xf32> to vector<4x16xf32>
    %c0_289 = arith.constant 0 : index
    %c0_290 = arith.constant 0 : index
    %c14_291 = arith.constant 14 : index
    %c1_292 = arith.constant 1 : index
    %306 = tpu.strided_load %arg5[%c0_289, %c0_290, %c14_291, %c1_292] {strides = array<i32: 1, 1, 1, 2>} : memref<1x4x16x64xf32, #tpu.memory_space<vmem>>, vector<1x4x1x16xf32>
    %307 = vector.shape_cast %306 : vector<1x4x1x16xf32> to vector<4x16xf32>
    %308 = vector.shape_cast %305 : vector<4x16xf32> to vector<1x4x1x16xf32>
    tpu.strided_store %arg5[%c0_289, %c0_290, %c14_291, %c1_292], %308 {strides = array<i32: 1, 1, 1, 2>} : memref<1x4x16x64xf32, #tpu.memory_space<vmem>>, vector<1x4x1x16xf32>
    %309 = vector.extract_strided_slice %300 {offsets = [8, 0], sizes = [4, 16], strides = [1, 1]} : vector<16x16xf32> to vector<4x16xf32>
    %c0_293 = arith.constant 0 : index
    %c0_294 = arith.constant 0 : index
    %c14_295 = arith.constant 14 : index
    %c32_296 = arith.constant 32 : index
    %310 = tpu.strided_load %arg5[%c0_293, %c0_294, %c14_295, %c32_296] {strides = array<i32: 1, 1, 1, 2>} : memref<1x4x16x64xf32, #tpu.memory_space<vmem>>, vector<1x4x1x16xf32>
    %311 = vector.shape_cast %310 : vector<1x4x1x16xf32> to vector<4x16xf32>
    %312 = vector.shape_cast %309 : vector<4x16xf32> to vector<1x4x1x16xf32>
    tpu.strided_store %arg5[%c0_293, %c0_294, %c14_295, %c32_296], %312 {strides = array<i32: 1, 1, 1, 2>} : memref<1x4x16x64xf32, #tpu.memory_space<vmem>>, vector<1x4x1x16xf32>
    %313 = vector.extract_strided_slice %300 {offsets = [12, 0], sizes = [4, 16], strides = [1, 1]} : vector<16x16xf32> to vector<4x16xf32>
    %c0_297 = arith.constant 0 : index
    %c0_298 = arith.constant 0 : index
    %c14_299 = arith.constant 14 : index
    %c33_300 = arith.constant 33 : index
    %314 = tpu.strided_load %arg5[%c0_297, %c0_298, %c14_299, %c33_300] {strides = array<i32: 1, 1, 1, 2>} : memref<1x4x16x64xf32, #tpu.memory_space<vmem>>, vector<1x4x1x16xf32>
    %315 = vector.shape_cast %314 : vector<1x4x1x16xf32> to vector<4x16xf32>
    %316 = vector.shape_cast %313 : vector<4x16xf32> to vector<1x4x1x16xf32>
    tpu.strided_store %arg5[%c0_297, %c0_298, %c14_299, %c33_300], %316 {strides = array<i32: 1, 1, 1, 2>} : memref<1x4x16x64xf32, #tpu.memory_space<vmem>>, vector<1x4x1x16xf32>
    %c0_301 = arith.constant 0 : index
    %c0_302 = arith.constant 0 : index
    %c15 = arith.constant 15 : index
    %c0_303 = arith.constant 0 : index
    %317 = vector.load %arg2[%c0_301, %c0_302, %c15, %c0_303] : memref<1x4x16x16xf32, #tpu.memory_space<vmem>>, vector<1x4x1x16xf32>
    %318 = vector.shape_cast %317 : vector<1x4x1x16xf32> to vector<4x16xf32>
    %cst_304 = arith.constant dense<0.000000e+00> : vector<16x16xf32>
    %319 = tpu.matmul %0, %318, %cst_304 {dimension_numbers = #tpu.dot_dimension_numbers<[1], [0], [0], [1], [0, 0, 1, 1], [], []>} : vector<16x4xf32>, vector<4x16xf32>, vector<16x16xf32> -> vector<16x16xf32>
    %320 = vector.broadcast %1 : vector<16x1xf32> to vector<16x16xf32>
    %321 = arith.addf %319, %320 : vector<16x16xf32>
    %322 = vector.extract_strided_slice %321 {offsets = [0, 0], sizes = [4, 16], strides = [1, 1]} : vector<16x16xf32> to vector<4x16xf32>
    %c0_305 = arith.constant 0 : index
    %c0_306 = arith.constant 0 : index
    %c15_307 = arith.constant 15 : index
    %c0_308 = arith.constant 0 : index
    %323 = tpu.strided_load %arg5[%c0_305, %c0_306, %c15_307, %c0_308] {strides = array<i32: 1, 1, 1, 2>} : memref<1x4x16x64xf32, #tpu.memory_space<vmem>>, vector<1x4x1x16xf32>
    %324 = vector.shape_cast %323 : vector<1x4x1x16xf32> to vector<4x16xf32>
    %325 = vector.shape_cast %322 : vector<4x16xf32> to vector<1x4x1x16xf32>
    tpu.strided_store %arg5[%c0_305, %c0_306, %c15_307, %c0_308], %325 {strides = array<i32: 1, 1, 1, 2>} : memref<1x4x16x64xf32, #tpu.memory_space<vmem>>, vector<1x4x1x16xf32>
    %326 = vector.extract_strided_slice %321 {offsets = [4, 0], sizes = [4, 16], strides = [1, 1]} : vector<16x16xf32> to vector<4x16xf32>
    %c0_309 = arith.constant 0 : index
    %c0_310 = arith.constant 0 : index
    %c15_311 = arith.constant 15 : index
    %c1_312 = arith.constant 1 : index
    %327 = tpu.strided_load %arg5[%c0_309, %c0_310, %c15_311, %c1_312] {strides = array<i32: 1, 1, 1, 2>} : memref<1x4x16x64xf32, #tpu.memory_space<vmem>>, vector<1x4x1x16xf32>
    %328 = vector.shape_cast %327 : vector<1x4x1x16xf32> to vector<4x16xf32>
    %329 = vector.shape_cast %326 : vector<4x16xf32> to vector<1x4x1x16xf32>
    tpu.strided_store %arg5[%c0_309, %c0_310, %c15_311, %c1_312], %329 {strides = array<i32: 1, 1, 1, 2>} : memref<1x4x16x64xf32, #tpu.memory_space<vmem>>, vector<1x4x1x16xf32>
    %330 = vector.extract_strided_slice %321 {offsets = [8, 0], sizes = [4, 16], strides = [1, 1]} : vector<16x16xf32> to vector<4x16xf32>
    %c0_313 = arith.constant 0 : index
    %c0_314 = arith.constant 0 : index
    %c15_315 = arith.constant 15 : index
    %c32_316 = arith.constant 32 : index
    %331 = tpu.strided_load %arg5[%c0_313, %c0_314, %c15_315, %c32_316] {strides = array<i32: 1, 1, 1, 2>} : memref<1x4x16x64xf32, #tpu.memory_space<vmem>>, vector<1x4x1x16xf32>
    %332 = vector.shape_cast %331 : vector<1x4x1x16xf32> to vector<4x16xf32>
    %333 = vector.shape_cast %330 : vector<4x16xf32> to vector<1x4x1x16xf32>
    tpu.strided_store %arg5[%c0_313, %c0_314, %c15_315, %c32_316], %333 {strides = array<i32: 1, 1, 1, 2>} : memref<1x4x16x64xf32, #tpu.memory_space<vmem>>, vector<1x4x1x16xf32>
    %334 = vector.extract_strided_slice %321 {offsets = [12, 0], sizes = [4, 16], strides = [1, 1]} : vector<16x16xf32> to vector<4x16xf32>
    %c0_317 = arith.constant 0 : index
    %c0_318 = arith.constant 0 : index
    %c15_319 = arith.constant 15 : index
    %c33_320 = arith.constant 33 : index
    %335 = tpu.strided_load %arg5[%c0_317, %c0_318, %c15_319, %c33_320] {strides = array<i32: 1, 1, 1, 2>} : memref<1x4x16x64xf32, #tpu.memory_space<vmem>>, vector<1x4x1x16xf32>
    %336 = vector.shape_cast %335 : vector<1x4x1x16xf32> to vector<4x16xf32>
    %337 = vector.shape_cast %334 : vector<4x16xf32> to vector<1x4x1x16xf32>
    tpu.strided_store %arg5[%c0_317, %c0_318, %c15_319, %c33_320], %337 {strides = array<i32: 1, 1, 1, 2>} : memref<1x4x16x64xf32, #tpu.memory_space<vmem>>, vector<1x4x1x16xf32>
    return
  }
  func.func @transform_0(%arg0: i32, %arg1: i32) -> (i32, i32, i32, i32) {
    %c0_i32 = arith.constant 0 : i32
    %c0_i32_0 = arith.constant 0 : i32
    %c0_i32_1 = arith.constant 0 : i32
    return %arg0, %c0_i32, %arg1, %c0_i32_0 : i32, i32, i32, i32
  }
  func.func @transform_1(%arg0: i32, %arg1: i32) -> (i32, i32) {
    %c0_i32 = arith.constant 0 : i32
    %c0_i32_0 = arith.constant 0 : i32
    %c0_i32_1 = arith.constant 0 : i32
    return %c0_i32, %c0_i32_0 : i32, i32
  }
  func.func @transform_2(%arg0: i32, %arg1: i32) -> (i32, i32) {
    %c0_i32 = arith.constant 0 : i32
    %c0_i32_0 = arith.constant 0 : i32
    %c0_i32_1 = arith.constant 0 : i32
    return %c0_i32, %c0_i32_0 : i32, i32
  }
  func.func @transform_3(%arg0: i32, %arg1: i32) -> (i32, i32, i32, i32) {
    %c0_i32 = arith.constant 0 : i32
    %c0_i32_0 = arith.constant 0 : i32
    %c0_i32_1 = arith.constant 0 : i32
    return %arg0, %c0_i32, %arg1, %c0_i32_0 : i32, i32, i32, i32
  }
}

module attributes {stable_mosaic.version = 11 : i64} {
  func.func @_haar_planes_kernel(%arg0: i32, %arg1: i32, %arg2: memref<1x4x256xf32, #tpu.memory_space<vmem>>, %arg3: memref<16x4xf32, #tpu.memory_space<vmem>>, %arg4: memref<16x1xf32, #tpu.memory_space<vmem>>, %arg5: memref<1x16x256xf32, #tpu.memory_space<vmem>>) attributes {dimension_semantics = [#tpu.dimension_semantics<parallel>, #tpu.dimension_semantics<parallel>], iteration_bounds = array<i64: 2, 1>, scalar_prefetch = 0 : i64, scratch_operands = 0 : i64, tpu.core_type = #tpu.core_type<tc>, window_params = [{transform_indices = @transform_0, window_bounds = array<i64: 1, 4, 256>}, {pipeline_mode = #tpu.pipeline_mode<synchronous>, transform_indices = @transform_1, window_bounds = array<i64: 16, 4>}, {pipeline_mode = #tpu.pipeline_mode<synchronous>, transform_indices = @transform_2, window_bounds = array<i64: 16, 1>}, {transform_indices = @transform_3, window_bounds = array<i64: 1, 16, 256>}]} {
    %c0 = arith.constant 0 : index
    %c0_0 = arith.constant 0 : index
    %0 = vector.load %arg3[%c0, %c0_0] : memref<16x4xf32, #tpu.memory_space<vmem>>, vector<16x4xf32>
    %c0_1 = arith.constant 0 : index
    %c0_2 = arith.constant 0 : index
    %c0_3 = arith.constant 0 : index
    %1 = vector.load %arg2[%c0_1, %c0_2, %c0_3] : memref<1x4x256xf32, #tpu.memory_space<vmem>>, vector<1x4x256xf32>
    %2 = vector.shape_cast %1 : vector<1x4x256xf32> to vector<4x256xf32>
    %cst = arith.constant dense<0.000000e+00> : vector<16x256xf32>
    %3 = tpu.matmul %0, %2, %cst {dimension_numbers = #tpu.dot_dimension_numbers<[1], [0], [0], [1], [0, 0, 1, 1], [], []>} : vector<16x4xf32>, vector<4x256xf32>, vector<16x256xf32> -> vector<16x256xf32>
    %c0_4 = arith.constant 0 : index
    %c0_5 = arith.constant 0 : index
    %4 = vector.load %arg4[%c0_4, %c0_5] : memref<16x1xf32, #tpu.memory_space<vmem>>, vector<16x1xf32>
    %5 = vector.broadcast %4 : vector<16x1xf32> to vector<16x256xf32>
    %6 = arith.addf %3, %5 : vector<16x256xf32>
    %c0_6 = arith.constant 0 : index
    %c0_7 = arith.constant 0 : index
    %c0_8 = arith.constant 0 : index
    %7 = vector.load %arg5[%c0_6, %c0_7, %c0_8] : memref<1x16x256xf32, #tpu.memory_space<vmem>>, vector<1x16x256xf32>
    %8 = vector.shape_cast %7 : vector<1x16x256xf32> to vector<16x256xf32>
    %9 = vector.shape_cast %6 : vector<16x256xf32> to vector<1x16x256xf32>
    tpu.vector_store %arg5[%c0_6, %c0_7, %c0_8], %9 {strides = array<i32>} : memref<1x16x256xf32, #tpu.memory_space<vmem>>, vector<1x16x256xf32>,
    return
  }
  func.func @transform_0(%arg0: i32, %arg1: i32) -> (i32, i32, i32) {
    %c0_i32 = arith.constant 0 : i32
    %c0_i32_0 = arith.constant 0 : i32
    return %arg0, %c0_i32, %arg1 : i32, i32, i32
  }
  func.func @transform_1(%arg0: i32, %arg1: i32) -> (i32, i32) {
    %c0_i32 = arith.constant 0 : i32
    %c0_i32_0 = arith.constant 0 : i32
    %c0_i32_1 = arith.constant 0 : i32
    return %c0_i32, %c0_i32_0 : i32, i32
  }
  func.func @transform_2(%arg0: i32, %arg1: i32) -> (i32, i32) {
    %c0_i32 = arith.constant 0 : i32
    %c0_i32_0 = arith.constant 0 : i32
    %c0_i32_1 = arith.constant 0 : i32
    return %c0_i32, %c0_i32_0 : i32, i32
  }
  func.func @transform_3(%arg0: i32, %arg1: i32) -> (i32, i32, i32) {
    %c0_i32 = arith.constant 0 : i32
    %c0_i32_0 = arith.constant 0 : i32
    return %arg0, %c0_i32, %arg1 : i32, i32, i32
  }
}

module attributes {stable_mosaic.version = 11 : i64} {
  func.func @_haar_planes_kernel(%arg0: i32, %arg1: i32, %arg2: memref<1x4x256xf32, #tpu.memory_space<vmem>>, %arg3: memref<16x4xf32, #tpu.memory_space<vmem>>, %arg4: memref<16x1xf32, #tpu.memory_space<vmem>>, %arg5: memref<1x16x256xf32, #tpu.memory_space<vmem>>) attributes {dimension_semantics = [#tpu.dimension_semantics<parallel>, #tpu.dimension_semantics<parallel>], iteration_bounds = array<i64: 2, 1>, scalar_prefetch = 0 : i64, scratch_operands = 0 : i64, tpu.core_type = #tpu.core_type<tc>, window_params = [{transform_indices = @transform_0, window_bounds = array<i64: 1, 4, 256>}, {pipeline_mode = #tpu.pipeline_mode<synchronous>, transform_indices = @transform_1, window_bounds = array<i64: 16, 4>}, {pipeline_mode = #tpu.pipeline_mode<synchronous>, transform_indices = @transform_2, window_bounds = array<i64: 16, 1>}, {transform_indices = @transform_3, window_bounds = array<i64: 1, 16, 256>}]} {
    %c0 = arith.constant 0 : index
    %c0_0 = arith.constant 0 : index
    %0 = vector.load %arg3[%c0, %c0_0] : memref<16x4xf32, #tpu.memory_space<vmem>>, vector<16x4xf32>
    %c0_1 = arith.constant 0 : index
    %c0_2 = arith.constant 0 : index
    %c0_3 = arith.constant 0 : index
    %1 = vector.load %arg2[%c0_1, %c0_2, %c0_3] : memref<1x4x256xf32, #tpu.memory_space<vmem>>, vector<1x4x256xf32>
    %2 = vector.shape_cast %1 : vector<1x4x256xf32> to vector<4x256xf32>
    %cst = arith.constant dense<0.000000e+00> : vector<16x256xf32>
    %3 = tpu.matmul %0, %2, %cst {dimension_numbers = #tpu.dot_dimension_numbers<[1], [0], [0], [1], [0, 0, 1, 1], [], []>} : vector<16x4xf32>, vector<4x256xf32>, vector<16x256xf32> -> vector<16x256xf32>
    %c0_4 = arith.constant 0 : index
    %c0_5 = arith.constant 0 : index
    %4 = vector.load %arg4[%c0_4, %c0_5] : memref<16x1xf32, #tpu.memory_space<vmem>>, vector<16x1xf32>
    %5 = vector.broadcast %4 : vector<16x1xf32> to vector<16x256xf32>
    %6 = arith.addf %3, %5 : vector<16x256xf32>
    %c0_6 = arith.constant 0 : index
    %c0_7 = arith.constant 0 : index
    %c0_8 = arith.constant 0 : index
    %7 = vector.load %arg5[%c0_6, %c0_7, %c0_8] : memref<1x16x256xf32, #tpu.memory_space<vmem>>, vector<1x16x256xf32>
    %8 = vector.shape_cast %7 : vector<1x16x256xf32> to vector<16x256xf32>
    %9 = vector.shape_cast %6 : vector<16x256xf32> to vector<1x16x256xf32>
    tpu.vector_store %arg5[%c0_6, %c0_7, %c0_8], %9 {strides = array<i32>} : memref<1x16x256xf32, #tpu.memory_space<vmem>>, vector<1x16x256xf32>,
    return
  }
  func.func @transform_0(%arg0: i32, %arg1: i32) -> (i32, i32, i32) {
    %c0_i32 = arith.constant 0 : i32
    %c0_i32_0 = arith.constant 0 : i32
    return %arg0, %c0_i32, %arg1 : i32, i32, i32
  }
  func.func @transform_1(%arg0: i32, %arg1: i32) -> (i32, i32) {
    %c0_i32 = arith.constant 0 : i32
    %c0_i32_0 = arith.constant 0 : i32
    %c0_i32_1 = arith.constant 0 : i32
    return %c0_i32, %c0_i32_0 : i32, i32
  }
  func.func @transform_2(%arg0: i32, %arg1: i32) -> (i32, i32) {
    %c0_i32 = arith.constant 0 : i32
    %c0_i32_0 = arith.constant 0 : i32
    %c0_i32_1 = arith.constant 0 : i32
    return %c0_i32, %c0_i32_0 : i32, i32
  }
  func.func @transform_3(%arg0: i32, %arg1: i32) -> (i32, i32, i32) {
    %c0_i32 = arith.constant 0 : i32
    %c0_i32_0 = arith.constant 0 : i32
    return %arg0, %c0_i32, %arg1 : i32, i32, i32
  }
}

</mosaic_0001>

<llo_original>
// kernel: tpu_custom_call.1
$region0: #{tpu_custom_call.1}
  #allocation0 [shape = 'u32[]', space=smem, size = 0x4, offset = 0x4, fixed_abs, tag = 'smem constant byte address 0x4 - core index']
  #allocation1 [shape = 'u32[144,128]{1,0:T(1,128)}', space=vmem, size = 0x12000, scoped, tag = 'internal scratch']
  %s0 = inlined_call_operand.vmem [shape: f32[2,4,256], index: 0, kind: input, shape index: {}]
  %s1 = inlined_call_operand.vmem [shape: f32[16,4], index: 1, kind: input, shape index: {}]
  %s2 = inlined_call_operand.vmem [shape: f32[16,1], index: 2, kind: input, shape index: {}]
  %s3 = inlined_call_operand.hbm [shape: f32[2,16,256], index: 3, kind: output, shape index: {}]
  %s4 = sld [smem:[#allocation0]]
  $region45: #{tpu_custom_call.1} parent=0
    _
  %s6 = ssub.s32 1, %s4
  %s7 = scalar_select 0, %s6, %s4
  $region1: #{tpu_custom_call.1} parent=0
    #allocation2 [shape = 'u8[32768]{0}', space=vmem, size = 0x8000, scoped, tag = 'output window, operand 0']
    #allocation3 [shape = 's32[2]{0}', space=sflag, size = 0x8, scoped, tag = 'scoped memory for tpu_custom_call.1']
    %8 = vsyncpa [#allocation3], 0
    %s9 = scalar_lea.sflag [#allocation3], 1
    %10 = vsyncpa %s9, 0
    loop: start=0, step=1, limit=4
    $region2: #{tpu_custom_call.1} parent=1 // loop_pre_header
      _
    $region3: #{tpu_custom_call.1} parent=1 // loop_header
      %s12 = sphi 0, %s16
      %p13 = scmp.ge.s32.totalorder %s12, 4
      %s19 = sphi 0, %s31
      %s20 = sphi 0, %s27
      %s21 = sphi 0, %s19
      %s22 = sphi 0, %s20
      %s23 = sphi 0, %s21
      %s24 = sphi 0, %s22
      %s36 = sphi 0, %s38
      %s39 = sphi 0, %s36
      %s40 = sphi 0, %s39
      %s56 = sphi 0, %s40
      %s60 = sphi 0, %s60
      %s62 = sphi 0, %s60
      %s63 = sphi 0, %s62
      %s77 = sphi 0, %s63
      %s81 = sphi 0, %s81
      %s83 = sphi 0, %s81
      %s84 = sphi 0, %s83
      %s98 = sphi 0, %s84
      %s106 = sphi 0, %s108
      %s109 = sphi 0, %s106
      %s110 = sphi 0, %s109
      %s126 = sphi 0, %s110
    $region4: #{tpu_custom_call.1} parent=1 // loop_header_branch
      %15 = sbr.rel (%p13) target = $region8
    $region5: #{tpu_custom_call.1} parent=1 // loop_body
      %s17 = ssub.s32 %s12, 1
      %s18 = ssub.s32 %s12, 2
      %s25 = sadd.s32 1, %s20
      %p26 = scmp.ge.s32.totalorder %s25, 1
      %s27 = scalar_select %p26, 0, %s25
      %s28 = sadd.s32 1, %s19
      %s29 = scalar_select %p26, %s28, %s19
      %p30 = scmp.ge.s32.totalorder %s29, 2
      %s31 = scalar_select %p30, 0, %s29
      %s32 = ssub.s32 %s19, %s31
      %s33 = ssub.s32 %s20, %s27
      %s34 = sor.u32 %s32, %s33
      %p35 = scmp.eq.s32.totalorder %s34, 0
      %s37 = sadd.s32 %s36, 1
      %s38 = scalar_select %p35, %s36, %s37
      %p41 = pneg %p35
      %p42 = scmp.eq.s32.totalorder %s12, 1
      %p43 = por %p41, %p42
      %p44 = scmp.ne.s32.totalorder %s36, %s39
      %p45 = scmp.eq.s32.totalorder %s12, 0
      %p46 = por %p44, %p45
      %p47 = scmp.ne.s32.totalorder %s36, %s39
      %p48 = scmp.eq.s32.totalorder %s17, 1
      %p49 = por %p47, %p48
      %p50 = scmp.ne.s32.totalorder %s39, %s40
      %p51 = scmp.eq.s32.totalorder %s17, 0
      %p52 = por %p50, %p51
      %p53 = scmp.ne.s32.totalorder %s39, %s40
      %p54 = scmp.eq.s32.totalorder %s18, 1
      %p55 = por %p53, %p54
      %p57 = scmp.ne.s32.totalorder %s40, %s56
      %p58 = scmp.eq.s32.totalorder %s18, 0
      %p59 = por %p57, %p58
      %s61 = sadd.s32 %s60, 1
      %p64 = scmp.eq.s32.totalorder %s12, 1
      %p65 = scmp.ne.s32.totalorder %s60, %s62
      %p66 = scmp.eq.s32.totalorder %s12, 0
      %p67 = por %p65, %p66
      %p68 = scmp.ne.s32.totalorder %s60, %s62
      %p69 = scmp.eq.s32.totalorder %s17, 1
      %p70 = por %p68, %p69
      %p71 = scmp.ne.s32.totalorder %s62, %s63
      %p72 = scmp.eq.s32.totalorder %s17, 0
      %p73 = por %p71, %p72
      %p74 = scmp.ne.s32.totalorder %s62, %s63
      %p75 = scmp.eq.s32.totalorder %s18, 1
      %p76 = por %p74, %p75
      %p78 = scmp.ne.s32.totalorder %s63, %s77
      %p79 = scmp.eq.s32.totalorder %s18, 0
      %p80 = por %p78, %p79
      %s82 = sadd.s32 %s81, 1
      %p85 = scmp.eq.s32.totalorder %s12, 1
      %p86 = scmp.ne.s32.totalorder %s81, %s83
      %p87 = scmp.eq.s32.totalorder %s12, 0
      %p88 = por %p86, %p87
      %p89 = scmp.ne.s32.totalorder %s81, %s83
      %p90 = scmp.eq.s32.totalorder %s17, 1
      %p91 = por %p89, %p90
      %p92 = scmp.ne.s32.totalorder %s83, %s84
      %p93 = scmp.eq.s32.totalorder %s17, 0
      %p94 = por %p92, %p93
      %p95 = scmp.ne.s32.totalorder %s83, %s84
      %p96 = scmp.eq.s32.totalorder %s18, 1
      %p97 = por %p95, %p96
      %p99 = scmp.ne.s32.totalorder %s84, %s98
      %p100 = scmp.eq.s32.totalorder %s18, 0
      %p101 = por %p99, %p100
      %s102 = ssub.s32 %s19, %s31
      %s103 = ssub.s32 %s20, %s27
      %s104 = sor.u32 %s102, %s103
      %p105 = scmp.eq.s32.totalorder %s104, 0
      %s107 = sadd.s32 %s106, 1
      %s108 = scalar_select %p105, %s106, %s107
      %p111 = pneg %p105
      %p112 = scmp.eq.s32.totalorder %s12, 1
      %p113 = por %p111, %p112
      %p114 = scmp.ne.s32.totalorder %s106, %s109
      %p115 = scmp.eq.s32.totalorder %s12, 0
      %p116 = por %p114, %p115
      %p117 = scmp.ne.s32.totalorder %s106, %s109
      %p118 = scmp.eq.s32.totalorder %s17, 1
      %p119 = por %p117, %p118
      %p120 = scmp.ne.s32.totalorder %s109, %s110
      %p121 = scmp.eq.s32.totalorder %s17, 0
      %p122 = por %p120, %p121
      %p123 = scmp.ne.s32.totalorder %s109, %s110
      %p124 = scmp.eq.s32.totalorder %s18, 1
      %p125 = por %p123, %p124
      %p127 = scmp.ne.s32.totalorder %s110, %s126
      %p128 = scmp.eq.s32.totalorder %s18, 0
      %p129 = por %p127, %p128
      %p130 = scmp.le.s32.totalorder 1, %s12
      %p131 = scmp.lt.s32.totalorder %s12, 3
      %p132 = pnand %p130, %p131
      %p133 = pneg %p132
      // Predicated region
      $region9: #{tpu_custom_call.1} parent=5 // pred_check
        _
      $region10: #{tpu_custom_call.1} parent=5 // pred_check_branch
        %135 = sbr.rel (%p132) target = $region12
      $region11: #{tpu_custom_call.1} parent=5 // pred_region
        %s136 = ssub.s32 %s12, 1
        // Predicated region
        $region13: #{tpu_custom_call.1} parent=11 // pred_check
          %p137 = pneg %p73
        $region14: #{tpu_custom_call.1} parent=11 // pred_check_branch
          %139 = sbr.rel (%p137) target = $region16
        $region15: #{tpu_custom_call.1} parent=11 // pred_region
          _
        $region16: #{tpu_custom_call.1} parent=11 // pred_fallthru
          _
        // Predicated region
        $region17: #{tpu_custom_call.1} parent=11 // pred_check
          %p140 = pneg %p94
        $region18: #{tpu_custom_call.1} parent=11 // pred_check_branch
          %142 = sbr.rel (%p140) target = $region20
        $region19: #{tpu_custom_call.1} parent=11 // pred_region
          _
        $region20: #{tpu_custom_call.1} parent=11 // pred_fallthru
          _
      $region12: #{tpu_custom_call.1} parent=5 // pred_fallthru
        _
      %p143 = scmp.lt.s32.totalorder %s12, 2
      // Predicated region
      $region21: #{tpu_custom_call.1} parent=5 // pred_check
        %p144 = pneg %p143
      $region22: #{tpu_custom_call.1} parent=5 // pred_check_branch
        %146 = sbr.rel (%p144) target = $region24
      $region23: #{tpu_custom_call.1} parent=5 // pred_region
        // Predicated region
        $region25: #{tpu_custom_call.1} parent=23 // pred_check
          %p147 = pneg %p46
        $region26: #{tpu_custom_call.1} parent=23 // pred_check_branch
          %149 = sbr.rel (%p147) target = $region28
        $region27: #{tpu_custom_call.1} parent=23 // pred_region
          %s150 = smul.u32 2, %s20
          %p151 = scmp.lt.s32.totalorder %s19, 1
          %s152 = scalar_select %p151, %s19, 1
          %p153 = scmp.lt.s32.totalorder %s150, 1
          %s154 = scalar_select %p153, %s150, 1
          %s155 = smul.addr %s152, 2
          %s156 = sadd.s32 %s154, %s155
          %s157 = smul.addr %s156, 4
          %s158 = scalar_lea.vmem %s0, %s157
          %s159 = smul.u32 2, %s20
        $region28: #{tpu_custom_call.1} parent=23 // pred_fallthru
          _
      $region24: #{tpu_custom_call.1} parent=5 // pred_fallthru
        _
      %p160 = scmp.le.s32.totalorder 1, %s12
      %p161 = scmp.lt.s32.totalorder %s12, 3
      %p162 = pnand %p160, %p161
      %p163 = pneg %p162
      // Predicated region
      $region29: #{tpu_custom_call.1} parent=5 // pred_check
        _
      $region30: #{tpu_custom_call.1} parent=5 // pred_check_branch
        %165 = sbr.rel (%p162) target = $region32
      $region31: #{tpu_custom_call.1} parent=5 // pred_region
        %s166 = ssub.s32 %s12, 1
        %s167 = smul.u32 2, %s22
        %p168 = scmp.lt.s32.totalorder %s21, 1
        %s169 = scalar_select %p168, %s21, 1
        %p170 = scmp.lt.s32.totalorder %s167, 1
        %s171 = scalar_select %p170, %s167, 1
        %s172 = smul.addr %s169, 2
        %s173 = sadd.s32 %s171, %s172
        %s174 = smul.addr %s173, 4
        %s175 = scalar_lea.vmem %s0, %s174
        %p176 = pneg %p52
        %p177 = pneg %p49
        %p178 = pneg %p73
        %p179 = pneg %p70
        %p180 = pneg %p94
        %p181 = pneg %p91
        %p182 = pneg %p122
        %p183 = pneg %p119
        %s184 = sand.u32 %s109, 1
        %s185 = scalar_lea.sflag [#allocation3], %s184
        %s186 = sand.u32 %s109, 1
        %s187 = smul.addr %s186, 32
        %s188 = scalar_lea.vmem [#allocation2], %s187
        %s189 = smul.u32 2, %s22
        %p190 = scmp.lt.s32.totalorder %s21, 1
        %s191 = scalar_select %p190, %s21, 1
        %p192 = scmp.lt.s32.totalorder %s189, 1
        %s193 = scalar_select %p192, %s189, 1
        %s194 = smul.addr %s191, 2
        %s195 = sadd.s32 %s193, %s194
        %s196 = smul.addr %s195, 4
        %s197 = scalar_lea.vmem %s0, %s196
        %s198 = smul.u32 2, %s22
        %s199 = smul.u32 2, %s22
        %v200 = vld [vmem:[%s1] sm:$0xff]
        %v201 = vld [vmem:[%s1 + $0x8] sm:$0xff]
        %v202 = vld [vmem:[%s197] sm:$0xff]
        %v203 = vld [vmem:[%s2] sm:$0xff]
        %v204 = vld [vmem:[%s2 + $0x8] sm:$0xff]
        %206 = vset.pattern.permute.xlu0 0
        %207 = vperm.xlu0 %206, %v203
        %v208 = vpop.permute.xlu0 %207
        %211 = vset.pattern.permute.xlu0 0
        %212 = vperm.xlu0 %211, %v204
        %v213 = vpop.permute.xlu0 %212
        %v216 = vcombine.high %v202, %v202
        %vm217 = vcmask 31744
        %v219 = vsel %vm217, %v200, 0
        %v222 = vsel %vm217, %v201, 0
        %vm224 = vcmask 1043456
        %v225 = vsel %vm224, %v202, 0
        %v227 = vsel %vm224, %v216, 0
        %229 = vmatprep.subr.mxu0 %v227
        %230 = vmatpush1.msra.mxu0 %v225
        %231 = vmatprep.subr.mxu0 0.0
        %232 = vmatpush1.msra.mxu0 0.0
        %233 = vmatprep.subr.mxu0 0.0
        %234 = vmatpush1.msra.mxu0 0.0
        %235 = vmatprep.subr.mxu0 0.0
        %236 = vmatpush1.msra.mxu0 0.0
        %237 = vmatprep.subr.mxu0 0.0
        %238 = vmatpush1.msra.mxu0 0.0
        %239 = vmatprep.subr.mxu0 0.0
        %240 = vmatpush1.msra.mxu0 0.0
        %241 = vmatprep.subr.mxu0 0.0
        %242 = vmatpush1.msra.mxu0 0.0
        %243 = vmatprep.subr.mxu0 0.0
        %244 = vmatpush1.msra.mxu0 0.0
        %245 = vmatprep.subr.mxu0 0.0
        %246 = vmatpush1.msra.mxu0 0.0
        %247 = vmatprep.subr.mxu0 0.0
        %248 = vmatpush1.msra.mxu0 0.0
        %249 = vmatprep.subr.mxu0 0.0
        %250 = vmatpush1.msra.mxu0 0.0
        %251 = vmatprep.subr.mxu0 0.0
        %252 = vmatpush1.msra.mxu0 0.0
        %253 = vmatprep.subr.mxu0 0.0
        %254 = vmatpush1.msra.mxu0 0.0
        %255 = vmatprep.subr.mxu0 0.0
        %256 = vmatpush1.msra.mxu0 0.0
        %257 = vmatprep.subr.mxu0 0.0
        %258 = vmatpush1.msra.mxu0 0.0
        %259 = vmatprep.subr.mxu0 0.0
        %260 = vmatpush1.msra.mxu0 0.0
        %261 = vmatprep.subr.mxu0 0.0
        %262 = vmatpush1.msra.mxu0 0.0
        %263 = vmatprep.subr.mxu0 0.0
        %264 = vmatpush1.msra.mxu0 0.0
        %265 = vmatprep.subr.mxu0 0.0
        %266 = vmatpush1.msra.mxu0 0.0
        %267 = vmatprep.subr.mxu0 0.0
        %268 = vmatpush1.msra.mxu0 0.0
        %269 = vmatprep.subr.mxu0 0.0
        %270 = vmatpush1.msra.mxu0 0.0
        %271 = vmatprep.subr.mxu0 0.0
        %272 = vmatpush1.msra.mxu0 0.0
        %273 = vmatprep.subr.mxu0 0.0
        %274 = vmatpush1.msra.mxu0 0.0
        %275 = vmatprep.subr.mxu0 0.0
        %276 = vmatpush1.msra.mxu0 0.0
        %277 = vmatprep.subr.mxu0 0.0
        %278 = vmatpush1.msra.mxu0 0.0
        %279 = vmatprep.subr.mxu0 0.0
        %280 = vmatpush1.msra.mxu0 0.0
        %281 = vmatprep.subr.mxu0 0.0
        %282 = vmatpush1.msra.mxu0 0.0
        %283 = vmatprep.subr.mxu0 0.0
        %284 = vmatpush1.msra.mxu0 0.0
        %285 = vmatprep.subr.mxu0 0.0
        %286 = vmatpush1.msra.mxu0 0.0
        %287 = vmatprep.subr.mxu0 0.0
        %288 = vmatpush1.msra.mxu0 0.0
        %289 = vmatprep.subr.mxu0 0.0
        %290 = vmatpush1.msra.mxu0 0.0
        %291 = vmatprep.subr.mxu0 0.0
        %292 = vmatpush1.msra.mxu0 0.0
        %293 = vmatprep.mubr.f32.mxu0 0.0
        %294 = vmatmul.mubr.f32.gmra.mrb[0].mxu0 %v219
        %v295 = vpop.f32.mrb[0].mxu0
        %v296 = vadd.f32 %v208, %v295
        %v297 = vpop.f32.mrb[0].mxu0
        %v298 = vadd.f32 %v208, %v297
        %299 = vmatprep.mubr.f32.mxu0 0.0
        %300 = vmatmul.mubr.f32.gmra.mrb[0].mxu0 %v222
        %v301 = vpop.f32.mrb[0].mxu0
        %v302 = vadd.f32 %v213, %v301
        %v303 = vpop.f32.mrb[0].mxu0
        %v304 = vadd.f32 %v213, %v303
        %305 = vdwg.mxu0
        %306 = vst [vmem:[%s188] sm:$0xff] %v296
        %307 = vst [vmem:[%s188 + $0x8] sm:$0xff] %v298
        %308 = vst [vmem:[%s188 + $0x10] sm:$0xff] %v302
        %309 = vst [vmem:[%s188 + $0x18] sm:$0xff] %v304
        %s310 = sand.u32 %s109, 1
        %s311 = scalar_lea.sflag [#allocation3], %s310
        %s312 = sand.u32 %s109, 1
        %s313 = smul.addr %s312, 32
        %s314 = scalar_lea.vmem [#allocation2], %s313
        // Predicated region
        $region33: #{tpu_custom_call.1} parent=31 // pred_check
          %p315 = pneg %p119
        $region34: #{tpu_custom_call.1} parent=31 // pred_check_branch
          %317 = sbr.rel (%p315) target = $region36
        $region35: #{tpu_custom_call.1} parent=31 // pred_region
          %s318 = smul.u32 2, %s22
          %s320 = ssub.s32 512, 512
          %321 = vsyncadd %s311, %s320
          %s322 = smul.addr %s21, 4
          %s323 = sadd.s32 %s318, %s322
          %s324 = smul.addr %s323, 128
          %s325 = scalar_lea.hbm %s3, %s324
          %s326 = sshll.u32 %s314, 4
          %s327 = int_to_ptr.vmem [resolvable:$true] %s326
          %332 = dma.vmem_to_hbm [thread:$0]  %s327, 512, %s325, %s311, 256, 256, 16
        $region36: #{tpu_custom_call.1} parent=31 // pred_fallthru
          _
      $region32: #{tpu_custom_call.1} parent=5 // pred_fallthru
        _
      %p333 = scmp.le.s32.totalorder 2, %s12
      // Predicated region
      $region37: #{tpu_custom_call.1} parent=5 // pred_check
        %p334 = pneg %p333
      $region38: #{tpu_custom_call.1} parent=5 // pred_check_branch
        %336 = sbr.rel (%p334) target = $region40
      $region39: #{tpu_custom_call.1} parent=5 // pred_region
        %s337 = ssub.s32 %s12, 2
        // Predicated region
        $region41: #{tpu_custom_call.1} parent=39 // pred_check
          %p338 = pneg %p125
        $region42: #{tpu_custom_call.1} parent=39 // pred_check_branch
          %340 = sbr.rel (%p338) target = $region44
        $region43: #{tpu_custom_call.1} parent=39 // pred_region
          %s341 = sand.u32 %s110, 1
          %s342 = scalar_lea.sflag [#allocation3], %s341
          %s343 = sand.u32 %s110, 1
          %s344 = smul.addr %s343, 32
          %s345 = scalar_lea.vmem [#allocation2], %s344
          %346 = dma.done %s342, 512
        $region44: #{tpu_custom_call.1} parent=39 // pred_fallthru
          _
      $region40: #{tpu_custom_call.1} parent=5 // pred_fallthru
        _
    $region6: #{tpu_custom_call.1} parent=1 // loop_footer
      %s16 = sadd.s32 1, %s12
    $region7: #{tpu_custom_call.1} parent=1 // loop_footer_branch
      %11 = sbr.rel target = $region3
    $region8: #{tpu_custom_call.1} parent=1 // loop_exit
      _
    %347 = vsyncpa [#allocation3], 1
    %s348 = scalar_lea.sflag [#allocation3], 1
    %349 = vsyncpa %s348, 1

// kernel: tpu_custom_call.1
$region0: #{tpu_custom_call.1}
  #allocation0 [shape = 'u32[]', space=smem, size = 0x4, offset = 0x4, fixed_abs, tag = 'smem constant byte address 0x4 - core index']
  #allocation1 [shape = 'u32[144,128]{1,0:T(1,128)}', space=vmem, size = 0x12000, scoped, tag = 'internal scratch']
  %s0 = inlined_call_operand.vmem [shape: f32[2,4,256], index: 0, kind: input, shape index: {}]
  %s1 = inlined_call_operand.vmem [shape: f32[16,4], index: 1, kind: input, shape index: {}]
  %s2 = inlined_call_operand.vmem [shape: f32[16,1], index: 2, kind: input, shape index: {}]
  %s3 = inlined_call_operand.hbm [shape: f32[2,16,256], index: 3, kind: output, shape index: {}]
  %s4 = sld [smem:[#allocation0]]
  $region45: #{tpu_custom_call.1} parent=0
    _
  %s6 = ssub.s32 1, %s4
  %s7 = scalar_select 0, %s6, %s4
  $region1: #{tpu_custom_call.1} parent=0
    #allocation2 [shape = 'u8[32768]{0}', space=vmem, size = 0x8000, scoped, tag = 'output window, operand 0']
    #allocation3 [shape = 's32[2]{0}', space=sflag, size = 0x8, scoped, tag = 'scoped memory for tpu_custom_call.1']
    %8 = vsyncpa [#allocation3], 0
    %s9 = scalar_lea.sflag [#allocation3], 1
    %10 = vsyncpa %s9, 0
    loop: start=0, step=1, limit=4
    $region2: #{tpu_custom_call.1} parent=1 // loop_pre_header
      _
    $region3: #{tpu_custom_call.1} parent=1 // loop_header
      %s12 = sphi 0, %s16
      %p13 = scmp.ge.s32.totalorder %s12, 4
      %s19 = sphi 0, %s31
      %s20 = sphi 0, %s27
      %s21 = sphi 0, %s19
      %s22 = sphi 0, %s20
      %s23 = sphi 0, %s21
      %s24 = sphi 0, %s22
      %s36 = sphi 0, %s38
      %s39 = sphi 0, %s36
      %s40 = sphi 0, %s39
      %s56 = sphi 0, %s40
      %s60 = sphi 0, %s60
      %s62 = sphi 0, %s60
      %s63 = sphi 0, %s62
      %s77 = sphi 0, %s63
      %s81 = sphi 0, %s81
      %s83 = sphi 0, %s81
      %s84 = sphi 0, %s83
      %s98 = sphi 0, %s84
      %s106 = sphi 0, %s108
      %s109 = sphi 0, %s106
      %s110 = sphi 0, %s109
      %s126 = sphi 0, %s110
    $region4: #{tpu_custom_call.1} parent=1 // loop_header_branch
      %15 = sbr.rel (%p13) target = $region8
    $region5: #{tpu_custom_call.1} parent=1 // loop_body
      %s17 = ssub.s32 %s12, 1
      %s18 = ssub.s32 %s12, 2
      %s25 = sadd.s32 1, %s20
      %p26 = scmp.ge.s32.totalorder %s25, 1
      %s27 = scalar_select %p26, 0, %s25
      %s28 = sadd.s32 1, %s19
      %s29 = scalar_select %p26, %s28, %s19
      %p30 = scmp.ge.s32.totalorder %s29, 2
      %s31 = scalar_select %p30, 0, %s29
      %s32 = ssub.s32 %s19, %s31
      %s33 = ssub.s32 %s20, %s27
      %s34 = sor.u32 %s32, %s33
      %p35 = scmp.eq.s32.totalorder %s34, 0
      %s37 = sadd.s32 %s36, 1
      %s38 = scalar_select %p35, %s36, %s37
      %p41 = pneg %p35
      %p42 = scmp.eq.s32.totalorder %s12, 1
      %p43 = por %p41, %p42
      %p44 = scmp.ne.s32.totalorder %s36, %s39
      %p45 = scmp.eq.s32.totalorder %s12, 0
      %p46 = por %p44, %p45
      %p47 = scmp.ne.s32.totalorder %s36, %s39
      %p48 = scmp.eq.s32.totalorder %s17, 1
      %p49 = por %p47, %p48
      %p50 = scmp.ne.s32.totalorder %s39, %s40
      %p51 = scmp.eq.s32.totalorder %s17, 0
      %p52 = por %p50, %p51
      %p53 = scmp.ne.s32.totalorder %s39, %s40
      %p54 = scmp.eq.s32.totalorder %s18, 1
      %p55 = por %p53, %p54
      %p57 = scmp.ne.s32.totalorder %s40, %s56
      %p58 = scmp.eq.s32.totalorder %s18, 0
      %p59 = por %p57, %p58
      %s61 = sadd.s32 %s60, 1
      %p64 = scmp.eq.s32.totalorder %s12, 1
      %p65 = scmp.ne.s32.totalorder %s60, %s62
      %p66 = scmp.eq.s32.totalorder %s12, 0
      %p67 = por %p65, %p66
      %p68 = scmp.ne.s32.totalorder %s60, %s62
      %p69 = scmp.eq.s32.totalorder %s17, 1
      %p70 = por %p68, %p69
      %p71 = scmp.ne.s32.totalorder %s62, %s63
      %p72 = scmp.eq.s32.totalorder %s17, 0
      %p73 = por %p71, %p72
      %p74 = scmp.ne.s32.totalorder %s62, %s63
      %p75 = scmp.eq.s32.totalorder %s18, 1
      %p76 = por %p74, %p75
      %p78 = scmp.ne.s32.totalorder %s63, %s77
      %p79 = scmp.eq.s32.totalorder %s18, 0
      %p80 = por %p78, %p79
      %s82 = sadd.s32 %s81, 1
      %p85 = scmp.eq.s32.totalorder %s12, 1
      %p86 = scmp.ne.s32.totalorder %s81, %s83
      %p87 = scmp.eq.s32.totalorder %s12, 0
      %p88 = por %p86, %p87
      %p89 = scmp.ne.s32.totalorder %s81, %s83
      %p90 = scmp.eq.s32.totalorder %s17, 1
      %p91 = por %p89, %p90
      %p92 = scmp.ne.s32.totalorder %s83, %s84
      %p93 = scmp.eq.s32.totalorder %s17, 0
      %p94 = por %p92, %p93
      %p95 = scmp.ne.s32.totalorder %s83, %s84
      %p96 = scmp.eq.s32.totalorder %s18, 1
      %p97 = por %p95, %p96
      %p99 = scmp.ne.s32.totalorder %s84, %s98
      %p100 = scmp.eq.s32.totalorder %s18, 0
      %p101 = por %p99, %p100
      %s102 = ssub.s32 %s19, %s31
      %s103 = ssub.s32 %s20, %s27
      %s104 = sor.u32 %s102, %s103
      %p105 = scmp.eq.s32.totalorder %s104, 0
      %s107 = sadd.s32 %s106, 1
      %s108 = scalar_select %p105, %s106, %s107
      %p111 = pneg %p105
      %p112 = scmp.eq.s32.totalorder %s12, 1
      %p113 = por %p111, %p112
      %p114 = scmp.ne.s32.totalorder %s106, %s109
      %p115 = scmp.eq.s32.totalorder %s12, 0
      %p116 = por %p114, %p115
      %p117 = scmp.ne.s32.totalorder %s106, %s109
      %p118 = scmp.eq.s32.totalorder %s17, 1
      %p119 = por %p117, %p118
      %p120 = scmp.ne.s32.totalorder %s109, %s110
      %p121 = scmp.eq.s32.totalorder %s17, 0
      %p122 = por %p120, %p121
      %p123 = scmp.ne.s32.totalorder %s109, %s110
      %p124 = scmp.eq.s32.totalorder %s18, 1
      %p125 = por %p123, %p124
      %p127 = scmp.ne.s32.totalorder %s110, %s126
      %p128 = scmp.eq.s32.totalorder %s18, 0
      %p129 = por %p127, %p128
      %p130 = scmp.le.s32.totalorder 1, %s12
      %p131 = scmp.lt.s32.totalorder %s12, 3
      %p132 = pnand %p130, %p131
      %p133 = pneg %p132
      // Predicated region
      $region9: #{tpu_custom_call.1} parent=5 // pred_check
        _
      $region10: #{tpu_custom_call.1} parent=5 // pred_check_branch
        %135 = sbr.rel (%p132) target = $region12
      $region11: #{tpu_custom_call.1} parent=5 // pred_region
        %s136 = ssub.s32 %s12, 1
        // Predicated region
        $region13: #{tpu_custom_call.1} parent=11 // pred_check
          %p137 = pneg %p73
        $region14: #{tpu_custom_call.1} parent=11 // pred_check_branch
          %139 = sbr.rel (%p137) target = $region16
        $region15: #{tpu_custom_call.1} parent=11 // pred_region
          _
        $region16: #{tpu_custom_call.1} parent=11 // pred_fallthru
          _
        // Predicated region
        $region17: #{tpu_custom_call.1} parent=11 // pred_check
          %p140 = pneg %p94
        $region18: #{tpu_custom_call.1} parent=11 // pred_check_branch
          %142 = sbr.rel (%p140) target = $region20
        $region19: #{tpu_custom_call.1} parent=11 // pred_region
          _
        $region20: #{tpu_custom_call.1} parent=11 // pred_fallthru
          _
      $region12: #{tpu_custom_call.1} parent=5 // pred_fallthru
        _
      %p143 = scmp.lt.s32.totalorder %s12, 2
      // Predicated region
      $region21: #{tpu_custom_call.1} parent=5 // pred_check
        %p144 = pneg %p143
      $region22: #{tpu_custom_call.1} parent=5 // pred_check_branch
        %146 = sbr.rel (%p144) target = $region24
      $region23: #{tpu_custom_call.1} parent=5 // pred_region
        // Predicated region
        $region25: #{tpu_custom_call.1} parent=23 // pred_check
          %p147 = pneg %p46
        $region26: #{tpu_custom_call.1} parent=23 // pred_check_branch
          %149 = sbr.rel (%p147) target = $region28
        $region27: #{tpu_custom_call.1} parent=23 // pred_region
          %s150 = smul.u32 2, %s20
          %p151 = scmp.lt.s32.totalorder %s19, 1
          %s152 = scalar_select %p151, %s19, 1
          %p153 = scmp.lt.s32.totalorder %s150, 1
          %s154 = scalar_select %p153, %s150, 1
          %s155 = smul.addr %s152, 2
          %s156 = sadd.s32 %s154, %s155
          %s157 = smul.addr %s156, 4
          %s158 = scalar_lea.vmem %s0, %s157
          %s159 = smul.u32 2, %s20
        $region28: #{tpu_custom_call.1} parent=23 // pred_fallthru
          _
      $region24: #{tpu_custom_call.1} parent=5 // pred_fallthru
        _
      %p160 = scmp.le.s32.totalorder 1, %s12
      %p161 = scmp.lt.s32.totalorder %s12, 3
      %p162 = pnand %p160, %p161
      %p163 = pneg %p162
      // Predicated region
      $region29: #{tpu_custom_call.1} parent=5 // pred_check
        _
      $region30: #{tpu_custom_call.1} parent=5 // pred_check_branch
        %165 = sbr.rel (%p162) target = $region32
      $region31: #{tpu_custom_call.1} parent=5 // pred_region
        %s166 = ssub.s32 %s12, 1
        %s167 = smul.u32 2, %s22
        %p168 = scmp.lt.s32.totalorder %s21, 1
        %s169 = scalar_select %p168, %s21, 1
        %p170 = scmp.lt.s32.totalorder %s167, 1
        %s171 = scalar_select %p170, %s167, 1
        %s172 = smul.addr %s169, 2
        %s173 = sadd.s32 %s171, %s172
        %s174 = smul.addr %s173, 4
        %s175 = scalar_lea.vmem %s0, %s174
        %p176 = pneg %p52
        %p177 = pneg %p49
        %p178 = pneg %p73
        %p179 = pneg %p70
        %p180 = pneg %p94
        %p181 = pneg %p91
        %p182 = pneg %p122
        %p183 = pneg %p119
        %s184 = sand.u32 %s109, 1
        %s185 = scalar_lea.sflag [#allocation3], %s184
        %s186 = sand.u32 %s109, 1
        %s187 = smul.addr %s186, 32
        %s188 = scalar_lea.vmem [#allocation2], %s187
        %s189 = smul.u32 2, %s22
        %p190 = scmp.lt.s32.totalorder %s21, 1
        %s191 = scalar_select %p190, %s21, 1
        %p192 = scmp.lt.s32.totalorder %s189, 1
        %s193 = scalar_select %p192, %s189, 1
        %s194 = smul.addr %s191, 2
        %s195 = sadd.s32 %s193, %s194
        %s196 = smul.addr %s195, 4
        %s197 = scalar_lea.vmem %s0, %s196
        %s198 = smul.u32 2, %s22
        %s199 = smul.u32 2, %s22
        %v200 = vld [vmem:[%s1] sm:$0xff]
        %v201 = vld [vmem:[%s1 + $0x8] sm:$0xff]
        %v202 = vld [vmem:[%s197] sm:$0xff]
        %v203 = vld [vmem:[%s2] sm:$0xff]
        %v204 = vld [vmem:[%s2 + $0x8] sm:$0xff]
        %206 = vset.pattern.permute.xlu0 0
        %207 = vperm.xlu0 %206, %v203
        %v208 = vpop.permute.xlu0 %207
        %211 = vset.pattern.permute.xlu0 0
        %212 = vperm.xlu0 %211, %v204
        %v213 = vpop.permute.xlu0 %212
        %v216 = vcombine.high %v202, %v202
        %vm217 = vcmask 31744
        %v219 = vsel %vm217, %v200, 0
        %v222 = vsel %vm217, %v201, 0
        %vm224 = vcmask 1043456
        %v225 = vsel %vm224, %v202, 0
        %v227 = vsel %vm224, %v216, 0
        %229 = vmatprep.subr.mxu0 %v227
        %230 = vmatpush1.msra.mxu0 %v225
        %231 = vmatprep.subr.mxu0 0.0
        %232 = vmatpush1.msra.mxu0 0.0
        %233 = vmatprep.subr.mxu0 0.0
        %234 = vmatpush1.msra.mxu0 0.0
        %235 = vmatprep.subr.mxu0 0.0
        %236 = vmatpush1.msra.mxu0 0.0
        %237 = vmatprep.subr.mxu0 0.0
        %238 = vmatpush1.msra.mxu0 0.0
        %239 = vmatprep.subr.mxu0 0.0
        %240 = vmatpush1.msra.mxu0 0.0
        %241 = vmatprep.subr.mxu0 0.0
        %242 = vmatpush1.msra.mxu0 0.0
        %243 = vmatprep.subr.mxu0 0.0
        %244 = vmatpush1.msra.mxu0 0.0
        %245 = vmatprep.subr.mxu0 0.0
        %246 = vmatpush1.msra.mxu0 0.0
        %247 = vmatprep.subr.mxu0 0.0
        %248 = vmatpush1.msra.mxu0 0.0
        %249 = vmatprep.subr.mxu0 0.0
        %250 = vmatpush1.msra.mxu0 0.0
        %251 = vmatprep.subr.mxu0 0.0
        %252 = vmatpush1.msra.mxu0 0.0
        %253 = vmatprep.subr.mxu0 0.0
        %254 = vmatpush1.msra.mxu0 0.0
        %255 = vmatprep.subr.mxu0 0.0
        %256 = vmatpush1.msra.mxu0 0.0
        %257 = vmatprep.subr.mxu0 0.0
        %258 = vmatpush1.msra.mxu0 0.0
        %259 = vmatprep.subr.mxu0 0.0
        %260 = vmatpush1.msra.mxu0 0.0
        %261 = vmatprep.subr.mxu0 0.0
        %262 = vmatpush1.msra.mxu0 0.0
        %263 = vmatprep.subr.mxu0 0.0
        %264 = vmatpush1.msra.mxu0 0.0
        %265 = vmatprep.subr.mxu0 0.0
        %266 = vmatpush1.msra.mxu0 0.0
        %267 = vmatprep.subr.mxu0 0.0
        %268 = vmatpush1.msra.mxu0 0.0
        %269 = vmatprep.subr.mxu0 0.0
        %270 = vmatpush1.msra.mxu0 0.0
        %271 = vmatprep.subr.mxu0 0.0
        %272 = vmatpush1.msra.mxu0 0.0
        %273 = vmatprep.subr.mxu0 0.0
        %274 = vmatpush1.msra.mxu0 0.0
        %275 = vmatprep.subr.mxu0 0.0
        %276 = vmatpush1.msra.mxu0 0.0
        %277 = vmatprep.subr.mxu0 0.0
        %278 = vmatpush1.msra.mxu0 0.0
        %279 = vmatprep.subr.mxu0 0.0
        %280 = vmatpush1.msra.mxu0 0.0
        %281 = vmatprep.subr.mxu0 0.0
        %282 = vmatpush1.msra.mxu0 0.0
        %283 = vmatprep.subr.mxu0 0.0
        %284 = vmatpush1.msra.mxu0 0.0
        %285 = vmatprep.subr.mxu0 0.0
        %286 = vmatpush1.msra.mxu0 0.0
        %287 = vmatprep.subr.mxu0 0.0
        %288 = vmatpush1.msra.mxu0 0.0
        %289 = vmatprep.subr.mxu0 0.0
        %290 = vmatpush1.msra.mxu0 0.0
        %291 = vmatprep.subr.mxu0 0.0
        %292 = vmatpush1.msra.mxu0 0.0
        %293 = vmatprep.mubr.f32.mxu0 0.0
        %294 = vmatmul.mubr.f32.gmra.mrb[0].mxu0 %v219
        %v295 = vpop.f32.mrb[0].mxu0
        %v296 = vadd.f32 %v208, %v295
        %v297 = vpop.f32.mrb[0].mxu0
        %v298 = vadd.f32 %v208, %v297
        %299 = vmatprep.mubr.f32.mxu0 0.0
        %300 = vmatmul.mubr.f32.gmra.mrb[0].mxu0 %v222
        %v301 = vpop.f32.mrb[0].mxu0
        %v302 = vadd.f32 %v213, %v301
        %v303 = vpop.f32.mrb[0].mxu0
        %v304 = vadd.f32 %v213, %v303
        %305 = vdwg.mxu0
        %306 = vst [vmem:[%s188] sm:$0xff] %v296
        %307 = vst [vmem:[%s188 + $0x8] sm:$0xff] %v298
        %308 = vst [vmem:[%s188 + $0x10] sm:$0xff] %v302
        %309 = vst [vmem:[%s188 + $0x18] sm:$0xff] %v304
        %s310 = sand.u32 %s109, 1
        %s311 = scalar_lea.sflag [#allocation3], %s310
        %s312 = sand.u32 %s109, 1
        %s313 = smul.addr %s312, 32
        %s314 = scalar_lea.vmem [#allocation2], %s313
        // Predicated region
        $region33: #{tpu_custom_call.1} parent=31 // pred_check
          %p315 = pneg %p119
        $region34: #{tpu_custom_call.1} parent=31 // pred_check_branch
          %317 = sbr.rel (%p315) target = $region36
        $region35: #{tpu_custom_call.1} parent=31 // pred_region
          %s318 = smul.u32 2, %s22
          %s320 = ssub.s32 512, 512
          %321 = vsyncadd %s311, %s320
          %s322 = smul.addr %s21, 4
          %s323 = sadd.s32 %s318, %s322
          %s324 = smul.addr %s323, 128
          %s325 = scalar_lea.hbm %s3, %s324
          %s326 = sshll.u32 %s314, 4
          %s327 = int_to_ptr.vmem [resolvable:$true] %s326
          %332 = dma.vmem_to_hbm [thread:$0]  %s327, 512, %s325, %s311, 256, 256, 16
        $region36: #{tpu_custom_call.1} parent=31 // pred_fallthru
          _
      $region32: #{tpu_custom_call.1} parent=5 // pred_fallthru
        _
      %p333 = scmp.le.s32.totalorder 2, %s12
      // Predicated region
      $region37: #{tpu_custom_call.1} parent=5 // pred_check
        %p334 = pneg %p333
      $region38: #{tpu_custom_call.1} parent=5 // pred_check_branch
        %336 = sbr.rel (%p334) target = $region40
      $region39: #{tpu_custom_call.1} parent=5 // pred_region
        %s337 = ssub.s32 %s12, 2
        // Predicated region
        $region41: #{tpu_custom_call.1} parent=39 // pred_check
          %p338 = pneg %p125
        $region42: #{tpu_custom_call.1} parent=39 // pred_check_branch
          %340 = sbr.rel (%p338) target = $region44
        $region43: #{tpu_custom_call.1} parent=39 // pred_region
          %s341 = sand.u32 %s110, 1
          %s342 = scalar_lea.sflag [#allocation3], %s341
          %s343 = sand.u32 %s110, 1
          %s344 = smul.addr %s343, 32
          %s345 = scalar_lea.vmem [#allocation2], %s344
          %346 = dma.done %s342, 512
        $region44: #{tpu_custom_call.1} parent=39 // pred_fallthru
          _
      $region40: #{tpu_custom_call.1} parent=5 // pred_fallthru
        _
    $region6: #{tpu_custom_call.1} parent=1 // loop_footer
      %s16 = sadd.s32 1, %s12
    $region7: #{tpu_custom_call.1} parent=1 // loop_footer_branch
      %11 = sbr.rel target = $region3
    $region8: #{tpu_custom_call.1} parent=1 // loop_exit
      _
    %347 = vsyncpa [#allocation3], 1
    %s348 = scalar_lea.sflag [#allocation3], 1
    %349 = vsyncpa %s348, 1

</llo_original>
